<compile_context>
chip_gen: v7x
topology: tpu7x:2x2x1
jax: 0.10.0
libtpu: 0.0.40
codegen_flags: <defaults>
</compile_context>

<pallas_src>
import functools

import jax
import jax.numpy as jnp
from jax import lax
from jax.experimental import pallas as pl
from jax.experimental.pallas import tpu as pltpu

_NEG = -1e30  # plain Python float -- jnp constants must not be captured by kernels


def _row_tile(n):
    """Destination-row tile: <=128 rows (VMEM budget), divides n, multiple of 8
    so f32/bf16 tiles keep a friendly sublane layout; else fall back to full."""
    for tm in (128, 64, 32, 16, 8):
        if n % tm == 0:
            return tm
    return n


def _vmem_specs(k):
    return [pl.BlockSpec(memory_space=pltpu.MemorySpace.VMEM) for _ in range(k)]


# ----------------------------------------------------------------------------
# Kernel 1: theta linear + fused attention-score matmul + squared norms,
# tiled over node rows.
#   xt = X @ W + b                      (N, Cout)
#   s2 = xt @ [a_dst | a_src]           (N, 2)  col0 = dst score, col1 = src score
#   sq = sum(xt^2, axis=1)              (N, 1)  (for the HyperGCN distance kernel)
# ----------------------------------------------------------------------------
def _theta_kernel(x_ref, w_ref, b_ref, a2_ref, xt_ref, s2_ref, sq_ref):
    xt = jnp.dot(x_ref[...], w_ref[...], preferred_element_type=jnp.float32)
    xt = xt + b_ref[...]
    xt_ref[...] = xt
    s2_ref[...] = jnp.dot(xt, a2_ref[...], preferred_element_type=jnp.float32)
    sq_ref[...] = jnp.sum(xt * xt, axis=1, keepdims=True)


def theta_scores(x, w, b, a_src, a_dst):
    n, c_in = x.shape
    c_out = w.shape[1]
    a2 = jnp.concatenate([a_dst, a_src], axis=1)  # (Cout, 2)
    tm = _row_tile(n)
    return pl.pallas_call(
        _theta_kernel,
        out_shape=(jax.ShapeDtypeStruct((n, c_out), jnp.float32),
                   jax.ShapeDtypeStruct((n, 2), jnp.float32),
                   jax.ShapeDtypeStruct((n, 1), jnp.float32)),
        grid=(n // tm,),
        in_specs=[pl.BlockSpec((tm, c_in), lambda i: (i, 0)),
                  pl.BlockSpec((c_in, c_out), lambda i: (0, 0)),
                  pl.BlockSpec((1, c_out), lambda i: (0, 0)),
                  pl.BlockSpec((c_out, 2), lambda i: (0, 0))],
        out_specs=(pl.BlockSpec((tm, c_out), lambda i: (i, 0)),
                   pl.BlockSpec((tm, 2), lambda i: (i, 0)),
                   pl.BlockSpec((tm, 1), lambda i: (i, 0))),
        compiler_params=pltpu.CompilerParams(dimension_semantics=("parallel",)),
    )(x, w, b, a2)


# ----------------------------------------------------------------------------
# Kernel 2: masked-softmax GAT aggregation fused with the HyperGCN pairwise
# squared-distance gram matmul, tiled over destination rows.
#   S[i, j]  = LeakyReLU(a_dst.xt[i] + a_src.xt[j]);  softmax over sources j
#              restricted to adj[i, j] != 0;  xg[i] = sum_j attn[i, j] * xt[j].
#   d2[i, j] = |xt[i]|^2 + |xt[j]|^2 - 2 xt[i].xt[j]   (for hypergraph->graph).
# Softmax normalization is deferred to the (TM, C) output rows.
# ----------------------------------------------------------------------------
def _attn_dist_kernel(adj_ref, sdst_ref, ssrc_ref, xtr_ref, xt_ref, xtt_ref,
                      sqd_ref, sqs_ref, xg_ref, d2_ref, *, neg_slope):
    # --- GAT masked softmax aggregation ------------------------------------
    keep = adj_ref[...] > 0                                   # (TM, N) bool
    s = sdst_ref[...] + ssrc_ref[...]                         # (TM,1)+(1,N) -> (TM,N)
    s = jnp.where(s >= 0, s, neg_slope * s)                   # LeakyReLU
    # attention dropout is identity in eval mode.
    s = jnp.where(keep, s, _NEG)
    row_max = jnp.max(s, axis=1, keepdims=True)
    p = jnp.where(keep, jnp.exp(s - row_max), 0.0)            # unnormalized probs
    denom = jnp.sum(p, axis=1, keepdims=True)                 # (TM, 1)
    xg_un = jnp.dot(p, xt_ref[...], preferred_element_type=jnp.float32)
    safe = jnp.where(denom > 0, denom, 1.0)
    xg_ref[...] = xg_un * pl.reciprocal(safe, approx=False)

    # --- pairwise squared distances (xt already resident; one extra MXU op) --
    gram = jnp.dot(xtr_ref[...], xtt_ref[...], preferred_element_type=jnp.float32)
    d2_ref[...] = sqd_ref[...] + sqs_ref[...] - 2.0 * gram


def gat_aggregate_and_dist(adj_mask, s_dst, s_src_row, xt, sq, sq_row,
                           *, neg_slope=0.2):
    n, c = xt.shape
    tm = _row_tile(n)
    xt_t = xt.T  # (C, N): cheap XLA transpose so the kernel uses a plain MXU matmul
    kernel = functools.partial(_attn_dist_kernel, neg_slope=neg_slope)
    return pl.pallas_call(
        kernel,
        out_shape=(jax.ShapeDtypeStruct((n, c), jnp.float32),
                   jax.ShapeDtypeStruct((n, n), jnp.float32)),
        grid=(n // tm,),
        in_specs=[pl.BlockSpec((tm, n), lambda i: (i, 0)),   # adj tile (bf16 mask)
                  pl.BlockSpec((tm, 1), lambda i: (i, 0)),   # per-dst score tile
                  pl.BlockSpec((1, n), lambda i: (0, 0)),    # per-src scores (resident)
                  pl.BlockSpec((tm, c), lambda i: (i, 0)),   # xt rows (gram lhs)
                  pl.BlockSpec((n, c), lambda i: (0, 0)),    # xt (resident, aggregation rhs)
                  pl.BlockSpec((c, n), lambda i: (0, 0)),    # xt^T (resident, gram rhs)
                  pl.BlockSpec((tm, 1), lambda i: (i, 0)),   # |xt_i|^2 rows
                  pl.BlockSpec((1, n), lambda i: (0, 0))],   # |xt_j|^2 (resident)
        out_specs=(pl.BlockSpec((tm, c), lambda i: (i, 0)),
                   pl.BlockSpec((tm, n), lambda i: (i, 0))),
        compiler_params=pltpu.CompilerParams(dimension_semantics=("parallel",)),
    )(adj_mask, s_dst, s_src_row, xt, xt, xt_t, sq, sq_row)


# ----------------------------------------------------------------------------
# Kernel 3: GCN smoothing with the HyperGCN-derived graph + ELU (+ optional
# trailing ReLU from GAT_HGCN.encode), tiled over destination rows.
# ----------------------------------------------------------------------------
def _gcn_kernel(ahat_ref, xg_ref, o_ref, *, apply_relu):
    x1 = jnp.dot(ahat_ref[...], xg_ref[...], preferred_element_type=jnp.float32)
    out = jnp.where(x1 > 0, x1, jnp.exp(jnp.minimum(x1, 0.0)) - 1.0)   # ELU(alpha=1)
    if apply_relu:
        out = jnp.maximum(out, 0.0)
    o_ref[...] = out


def gcn_smooth_elu(a_hat, xg, *, apply_relu):
    n, c = xg.shape
    tm = _row_tile(n)
    kernel = functools.partial(_gcn_kernel, apply_relu=apply_relu)
    return pl.pallas_call(
        kernel,
        out_shape=jax.ShapeDtypeStruct((n, c), jnp.float32),
        grid=(n // tm,),
        in_specs=[pl.BlockSpec((tm, n), lambda i: (i, 0)),
                  pl.BlockSpec((n, c), lambda i: (0, 0))],
        out_specs=pl.BlockSpec((tm, c), lambda i: (i, 0)),
        compiler_params=pltpu.CompilerParams(dimension_semantics=("parallel",)),
    )(a_hat, xg)


# ----------------------------------------------------------------------------
# Kernel 4: readout -- max-pool nodes of the last hyperedge, Linear(C,1)+Sigmoid.
# ----------------------------------------------------------------------------
def _readout_kernel(x_ref, mask_ref, w_ref, b_ref, o_ref):
    pooled = jnp.max(jnp.where(mask_ref[...] > 0, x_ref[...], _NEG),
                     axis=0, keepdims=True)                              # (1, C)
    y = jnp.dot(pooled, w_ref[...], preferred_element_type=jnp.float32) + b_ref[...]
    o_ref[...] = 1.0 / (1.0 + jnp.exp(-y))


def readout(x, edge_mask, w_fc, b_fc):
    return pl.pallas_call(
        _readout_kernel,
        out_shape=jax.ShapeDtypeStruct((1, 1), jnp.float32),
        in_specs=_vmem_specs(4),
        out_specs=pl.BlockSpec(memory_space=pltpu.MemorySpace.VMEM),
    )(x, edge_mask, w_fc, b_fc)


# ----------------------------------------------------------------------------
# JAX glue: Graph.from_hypergraph_hypergcn(hg, theta(X), with_mediator=False)
# followed by GCN normalization.  For each hyperedge connect the vertex pair
# with maximal feature distance (HyperGCN paper rule);
# A_hat = D^{-1/2} (A + I) D^{-1/2}.  Pairwise distances d2 are produced by the
# Pallas kernel above; here we only do the per-edge argmax + index scatter.
# TODO(synk): dhg picks the pair via a *random* 1-D projection and may weight
# edges differently on duplicates; we use the deterministic max-distance pair
# with weight 1 and de-duplication.
# ----------------------------------------------------------------------------
def build_hypergcn_ahat(h_inc, d2):
    n = d2.shape[0]
    eye = jnp.eye(n, dtype=jnp.float32)

    def per_edge(col):                                               # col: (N,)
        pair = (col[:, None] > 0) & (col[None, :] > 0) & (eye < 0.5)
        scores = jnp.where(pair, d2, -jnp.inf)
        idx = jnp.argmax(scores)
        valid = jnp.any(pair)                                        # >=2 distinct verts
        return idx // n, idx % n, valid.astype(jnp.float32)

    u, v, w = jax.vmap(per_edge)(h_inc.T)                            # (M,) each
    a = jnp.zeros((n, n), jnp.float32)
    a = a.at[u, v].max(w)                                            # scatter, dedup
    a = jnp.maximum(a, a.T)
    a_hat = a + jnp.eye(n, dtype=jnp.float32)
    d_inv = lax.rsqrt(jnp.sum(a_hat, axis=1))
    return d_inv[:, None] * a_hat * d_inv[None, :]


# ----------------------------------------------------------------------------
# Module-level forward passes
# ----------------------------------------------------------------------------
def gat_hgcn_conv(x, p, adj_mask, h_inc, *, apply_relu):
    xt, s2, sq = theta_scores(x, p["w_theta"], p["b_theta"], p["a_src"], p["a_dst"])
    s_dst = s2[:, 0:1]                        # (N, 1)
    s_src_row = jnp.transpose(s2[:, 1:2])     # (1, N)
    sq_row = jnp.transpose(sq)                # (1, N)
    xg, d2 = gat_aggregate_and_dist(adj_mask, s_dst, s_src_row, xt, sq, sq_row)
    a_hat = build_hypergcn_ahat(h_inc, d2)    # hypergcn graph built from theta(X)
    return gcn_smooth_elu(a_hat, xg, apply_relu=apply_relu)


def gat_hgcn_forward(x, adj, h_inc, params):
    # TODO(synk): the reference builds `hg1 = Hypergraph(hg.v, hg.e[0][:-1])`
    # only to print it; it never feeds the computation, so it is skipped here.
    adj_mask = adj.astype(jnp.bfloat16)       # exact 0/1 mask, half the HBM bytes
    x1 = gat_hgcn_conv(x, params["conv1"], adj_mask, h_inc, apply_relu=True)   # conv1 + .relu()
    x2 = gat_hgcn_conv(x1, params["conv2"], adj_mask, h_inc, apply_relu=False) # conv2
    last_edge_mask = h_inc[:, -1:]            # nodes of hg.e[0][-1], shape (N, 1)
    return readout(x2, last_edge_mask, params["w_fc"], params["b_fc"])         # (1, 1)


if __name__ == "__main__":
    key = jax.random.PRNGKey(0)
    n, c_in, c_h, c_out, m = 16, 8, 32, 16, 4
    keys = jax.random.split(key, 12)

    x = jax.random.normal(keys[0], (n, c_in), jnp.float32)

    # undirected graph as a dense directed-edge mask (both directions);
    # add a ring so every node has at least one neighbour.
    a = (jax.random.uniform(keys[1], (n, n)) < 0.3).astype(jnp.float32)
    a = jnp.maximum(a, a.T) * (1.0 - jnp.eye(n))
    ring = jnp.roll(jnp.eye(n), 1, axis=1)
    adj = jnp.maximum(a, jnp.maximum(ring, ring.T)).astype(jnp.float32)

    # hypergraph incidence matrix (N, M); guarantee >= 2 vertices per hyperedge
    h_inc = (jax.random.uniform(keys[2], (n, m)) < 0.35).astype(jnp.float32)
    h_inc = h_inc.at[0, :].set(1.0).at[1, :].set(1.0)

    def lin_init(k, fan_in, shape):
        bound = 1.0 / jnp.sqrt(jnp.float32(fan_in))
        return jax.random.uniform(k, shape, jnp.float32, -bound, bound)

    params = {
        "conv1": {
            "w_theta": lin_init(keys[3], c_in, (c_in, c_h)),
            "b_theta": lin_init(keys[4], c_in, (1, c_h)),
            "a_src":   lin_init(keys[5], c_h, (c_h, 1)),
            "a_dst":   lin_init(keys[6], c_h, (c_h, 1)),
        },
        "conv2": {
            "w_theta": lin_init(keys[7], c_h, (c_h, c_out)),
            "b_theta": lin_init(keys[8], c_h, (1, c_out)),
            "a_src":   lin_init(keys[9], c_out, (c_out, 1)),
            "a_dst":   lin_init(keys[10], c_out, (c_out, 1)),
        },
        "w_fc": lin_init(keys[11], c_out, (c_out, 1)),
        "b_fc": jnp.zeros((1, 1), jnp.float32),
    }

    out = jax.jit(gat_hgcn_forward)(x, adj, h_inc, params)
    jax.block_until_ready(out)
    assert out.shape == (1, 1) and out.dtype == jnp.float32
    print("KERNEL_OK")
</pallas_src>

<mosaic_0001>
module attributes {stable_mosaic.version = 11 : i64} {
  func.func @_theta_kernel(%arg0: i32, %arg1: memref<16x8xf32, #tpu.memory_space<vmem>>, %arg2: memref<8x32xf32, #tpu.memory_space<vmem>>, %arg3: memref<1x32xf32, #tpu.memory_space<vmem>>, %arg4: memref<32x2xf32, #tpu.memory_space<vmem>>, %arg5: memref<16x32xf32, #tpu.memory_space<vmem>>, %arg6: memref<16x2xf32, #tpu.memory_space<vmem>>, %arg7: memref<16x1xf32, #tpu.memory_space<vmem>>) attributes {dimension_semantics = [#tpu.dimension_semantics<parallel>], iteration_bounds = array<i64: 1>, scalar_prefetch = 0 : i64, scratch_operands = 0 : i64, tpu.core_type = #tpu.core_type<tc>, window_params = [{transform_indices = @transform_0, window_bounds = array<i64: 16, 8>}, {pipeline_mode = #tpu.pipeline_mode<synchronous>, transform_indices = @transform_1, window_bounds = array<i64: 8, 32>}, {pipeline_mode = #tpu.pipeline_mode<synchronous>, transform_indices = @transform_2, window_bounds = array<i64: 1, 32>}, {pipeline_mode = #tpu.pipeline_mode<synchronous>, transform_indices = @transform_3, window_bounds = array<i64: 32, 2>}, {transform_indices = @transform_4, window_bounds = array<i64: 16, 32>}, {transform_indices = @transform_5, window_bounds = array<i64: 16, 2>}, {transform_indices = @transform_6, window_bounds = array<i64: 16, 1>}]} {
    %c0 = arith.constant 0 : index
    %c0_0 = arith.constant 0 : index
    %0 = vector.load %arg1[%c0, %c0_0] : memref<16x8xf32, #tpu.memory_space<vmem>>, vector<16x8xf32>
    %c0_1 = arith.constant 0 : index
    %c0_2 = arith.constant 0 : index
    %1 = vector.load %arg2[%c0_1, %c0_2] : memref<8x32xf32, #tpu.memory_space<vmem>>, vector<8x32xf32>
    %cst = arith.constant dense<0.000000e+00> : vector<16x32xf32>
    %2 = tpu.matmul %0, %1, %cst {dimension_numbers = #tpu.dot_dimension_numbers<[1], [0], [0], [1], [0, 0, 1, 1], [], []>} : vector<16x8xf32>, vector<8x32xf32>, vector<16x32xf32> -> vector<16x32xf32>
    %c0_3 = arith.constant 0 : index
    %c0_4 = arith.constant 0 : index
    %3 = vector.load %arg3[%c0_3, %c0_4] : memref<1x32xf32, #tpu.memory_space<vmem>>, vector<1x32xf32>
    %4 = vector.broadcast %3 : vector<1x32xf32> to vector<16x32xf32>
    %5 = arith.addf %2, %4 : vector<16x32xf32>
    %c0_5 = arith.constant 0 : index
    %c0_6 = arith.constant 0 : index
    %6 = vector.load %arg5[%c0_5, %c0_6] : memref<16x32xf32, #tpu.memory_space<vmem>>, vector<16x32xf32>
    tpu.vector_store %arg5[%c0_5, %c0_6], %5 {strides = array<i32>} : memref<16x32xf32, #tpu.memory_space<vmem>>, vector<16x32xf32>,
    %c0_7 = arith.constant 0 : index
    %c0_8 = arith.constant 0 : index
    %7 = vector.load %arg4[%c0_7, %c0_8] : memref<32x2xf32, #tpu.memory_space<vmem>>, vector<32x2xf32>
    %cst_9 = arith.constant dense<0.000000e+00> : vector<16x2xf32>
    %8 = tpu.matmul %5, %7, %cst_9 {dimension_numbers = #tpu.dot_dimension_numbers<[1], [0], [0], [1], [0, 0, 1, 1], [], []>} : vector<16x32xf32>, vector<32x2xf32>, vector<16x2xf32> -> vector<16x2xf32>
    %c0_10 = arith.constant 0 : index
    %c0_11 = arith.constant 0 : index
    %9 = vector.load %arg6[%c0_10, %c0_11] : memref<16x2xf32, #tpu.memory_space<vmem>>, vector<16x2xf32>
    tpu.vector_store %arg6[%c0_10, %c0_11], %8 {strides = array<i32>} : memref<16x2xf32, #tpu.memory_space<vmem>>, vector<16x2xf32>,
    %10 = arith.mulf %5, %5 : vector<16x32xf32>
    %cst_12 = arith.constant dense<0.000000e+00> : vector<16xf32>
    %11 = vector.multi_reduction <add>, %10, %cst_12 [1] : vector<16x32xf32> to vector<16xf32>
    %12 = vector.shape_cast %11 : vector<16xf32> to vector<16x1xf32>
    %c0_13 = arith.constant 0 : index
    %c0_14 = arith.constant 0 : index
    %13 = vector.load %arg7[%c0_13, %c0_14] : memref<16x1xf32, #tpu.memory_space<vmem>>, vector<16x1xf32>
    tpu.vector_store %arg7[%c0_13, %c0_14], %12 {strides = array<i32>} : memref<16x1xf32, #tpu.memory_space<vmem>>, vector<16x1xf32>,
    return
  }
  func.func @transform_0(%arg0: i32) -> (i32, i32) {
    %c0_i32 = arith.constant 0 : i32
    %c0_i32_0 = arith.constant 0 : i32
    return %arg0, %c0_i32 : i32, i32
  }
  func.func @transform_1(%arg0: i32) -> (i32, i32) {
    %c0_i32 = arith.constant 0 : i32
    %c0_i32_0 = arith.constant 0 : i32
    %c0_i32_1 = arith.constant 0 : i32
    return %c0_i32, %c0_i32_0 : i32, i32
  }
  func.func @transform_2(%arg0: i32) -> (i32, i32) {
    %c0_i32 = arith.constant 0 : i32
    %c0_i32_0 = arith.constant 0 : i32
    %c0_i32_1 = arith.constant 0 : i32
    return %c0_i32, %c0_i32_0 : i32, i32
  }
  func.func @transform_3(%arg0: i32) -> (i32, i32) {
    %c0_i32 = arith.constant 0 : i32
    %c0_i32_0 = arith.constant 0 : i32
    %c0_i32_1 = arith.constant 0 : i32
    return %c0_i32, %c0_i32_0 : i32, i32
  }
  func.func @transform_4(%arg0: i32) -> (i32, i32) {
    %c0_i32 = arith.constant 0 : i32
    %c0_i32_0 = arith.constant 0 : i32
    return %arg0, %c0_i32 : i32, i32
  }
  func.func @transform_5(%arg0: i32) -> (i32, i32) {
    %c0_i32 = arith.constant 0 : i32
    %c0_i32_0 = arith.constant 0 : i32
    return %arg0, %c0_i32 : i32, i32
  }
  func.func @transform_6(%arg0: i32) -> (i32, i32) {
    %c0_i32 = arith.constant 0 : i32
    %c0_i32_0 = arith.constant 0 : i32
    return %arg0, %c0_i32 : i32, i32
  }
}

module attributes {stable_mosaic.version = 11 : i64} {
  func.func @_attn_dist_kernel(%arg0: i32, %arg1: memref<16x16xbf16, #tpu.memory_space<vmem>>, %arg2: memref<16x1xf32, #tpu.memory_space<vmem>>, %arg3: memref<1x16xf32, #tpu.memory_space<vmem>>, %arg4: memref<16x32xf32, #tpu.memory_space<vmem>>, %arg5: memref<16x32xf32, #tpu.memory_space<vmem>>, %arg6: memref<32x16xf32, #tpu.memory_space<vmem>>, %arg7: memref<16x1xf32, #tpu.memory_space<vmem>>, %arg8: memref<1x16xf32, #tpu.memory_space<vmem>>, %arg9: memref<16x32xf32, #tpu.memory_space<vmem>>, %arg10: memref<16x16xf32, #tpu.memory_space<vmem>>) attributes {dimension_semantics = [#tpu.dimension_semantics<parallel>], iteration_bounds = array<i64: 1>, scalar_prefetch = 0 : i64, scratch_operands = 0 : i64, tpu.core_type = #tpu.core_type<tc>, window_params = [{transform_indices = @transform_0, window_bounds = array<i64: 16, 16>}, {transform_indices = @transform_1, window_bounds = array<i64: 16, 1>}, {pipeline_mode = #tpu.pipeline_mode<synchronous>, transform_indices = @transform_2, window_bounds = array<i64: 1, 16>}, {transform_indices = @transform_3, window_bounds = array<i64: 16, 32>}, {pipeline_mode = #tpu.pipeline_mode<synchronous>, transform_indices = @transform_4, window_bounds = array<i64: 16, 32>}, {pipeline_mode = #tpu.pipeline_mode<synchronous>, transform_indices = @transform_5, window_bounds = array<i64: 32, 16>}, {transform_indices = @transform_6, window_bounds = array<i64: 16, 1>}, {pipeline_mode = #tpu.pipeline_mode<synchronous>, transform_indices = @transform_7, window_bounds = array<i64: 1, 16>}, {transform_indices = @transform_8, window_bounds = array<i64: 16, 32>}, {transform_indices = @transform_9, window_bounds = array<i64: 16, 16>}]} {
    %c0 = arith.constant 0 : index
    %c0_0 = arith.constant 0 : index
    %0 = vector.load %arg1[%c0, %c0_0] : memref<16x16xbf16, #tpu.memory_space<vmem>>, vector<16x16xbf16>
    %cst = arith.constant 0.000000e+00 : bf16
    %1 = vector.broadcast %cst : bf16 to vector<16x16xbf16>
    %2 = arith.cmpf ogt, %0, %1 : vector<16x16xbf16>
    %c0_1 = arith.constant 0 : index
    %c0_2 = arith.constant 0 : index
    %3 = vector.load %arg2[%c0_1, %c0_2] : memref<16x1xf32, #tpu.memory_space<vmem>>, vector<16x1xf32>
    %c0_3 = arith.constant 0 : index
    %c0_4 = arith.constant 0 : index
    %4 = vector.load %arg3[%c0_3, %c0_4] : memref<1x16xf32, #tpu.memory_space<vmem>>, vector<1x16xf32>
    %5 = vector.broadcast %3 : vector<16x1xf32> to vector<16x16xf32>
    %6 = vector.broadcast %4 : vector<1x16xf32> to vector<16x16xf32>
    %7 = arith.addf %5, %6 : vector<16x16xf32>
    %cst_5 = arith.constant 0.000000e+00 : f32
    %8 = vector.broadcast %cst_5 : f32 to vector<16x16xf32>
    %9 = arith.cmpf oge, %7, %8 : vector<16x16xf32>
    %cst_6 = arith.constant 2.000000e-01 : f32
    %10 = vector.broadcast %cst_6 : f32 to vector<16x16xf32>
    %11 = arith.mulf %10, %7 : vector<16x16xf32>
    %12 = arith.select %9, %7, %11 : vector<16x16xi1>, vector<16x16xf32>
    %cst_7 = arith.constant -1.000000e+30 : f32
    %13 = vector.broadcast %cst_7 : f32 to vector<16x16xf32>
    %14 = arith.select %2, %12, %13 : vector<16x16xi1>, vector<16x16xf32>
    %cst_8 = arith.constant dense<0xFF800000> : vector<16xf32>
    %15 = vector.multi_reduction <maximumf>, %14, %cst_8 [1] : vector<16x16xf32> to vector<16xf32>
    %16 = vector.shape_cast %15 : vector<16xf32> to vector<16x1xf32>
    %17 = vector.broadcast %16 : vector<16x1xf32> to vector<16x16xf32>
    %18 = arith.subf %14, %17 : vector<16x16xf32>
    %19 = math.exp %18 : vector<16x16xf32>
    %cst_9 = arith.constant 0.000000e+00 : f32
    %20 = vector.broadcast %cst_9 : f32 to vector<16x16xf32>
    %21 = arith.select %2, %19, %20 : vector<16x16xi1>, vector<16x16xf32>
    %cst_10 = arith.constant dense<0.000000e+00> : vector<16xf32>
    %22 = vector.multi_reduction <add>, %21, %cst_10 [1] : vector<16x16xf32> to vector<16xf32>
    %23 = vector.shape_cast %22 : vector<16xf32> to vector<16x1xf32>
    %c0_11 = arith.constant 0 : index
    %c0_12 = arith.constant 0 : index
    %24 = vector.load %arg5[%c0_11, %c0_12] : memref<16x32xf32, #tpu.memory_space<vmem>>, vector<16x32xf32>
    %cst_13 = arith.constant dense<0.000000e+00> : vector<16x32xf32>
    %25 = tpu.matmul %21, %24, %cst_13 {dimension_numbers = #tpu.dot_dimension_numbers<[1], [0], [0], [1], [0, 0, 1, 1], [], []>} : vector<16x16xf32>, vector<16x32xf32>, vector<16x32xf32> -> vector<16x32xf32>
    %cst_14 = arith.constant 0.000000e+00 : f32
    %26 = vector.broadcast %cst_14 : f32 to vector<16x1xf32>
    %27 = arith.cmpf ogt, %23, %26 : vector<16x1xf32>
    %cst_15 = arith.constant 1.000000e+00 : f32
    %28 = vector.broadcast %cst_15 : f32 to vector<16x1xf32>
    %29 = arith.select %27, %23, %28 : vector<16x1xi1>, vector<16x1xf32>
    %30 = tpu.reciprocal %29 : vector<16x1xf32> -> vector<16x1xf32>
    %31 = vector.broadcast %30 : vector<16x1xf32> to vector<16x32xf32>
    %32 = arith.mulf %25, %31 : vector<16x32xf32>
    %c0_16 = arith.constant 0 : index
    %c0_17 = arith.constant 0 : index
    %33 = vector.load %arg9[%c0_16, %c0_17] : memref<16x32xf32, #tpu.memory_space<vmem>>, vector<16x32xf32>
    tpu.vector_store %arg9[%c0_16, %c0_17], %32 {strides = array<i32>} : memref<16x32xf32, #tpu.memory_space<vmem>>, vector<16x32xf32>,
    %c0_18 = arith.constant 0 : index
    %c0_19 = arith.constant 0 : index
    %34 = vector.load %arg4[%c0_18, %c0_19] : memref<16x32xf32, #tpu.memory_space<vmem>>, vector<16x32xf32>
    %c0_20 = arith.constant 0 : index
    %c0_21 = arith.constant 0 : index
    %35 = vector.load %arg6[%c0_20, %c0_21] : memref<32x16xf32, #tpu.memory_space<vmem>>, vector<32x16xf32>
    %cst_22 = arith.constant dense<0.000000e+00> : vector<16x16xf32>
    %36 = tpu.matmul %34, %35, %cst_22 {dimension_numbers = #tpu.dot_dimension_numbers<[1], [0], [0], [1], [0, 0, 1, 1], [], []>} : vector<16x32xf32>, vector<32x16xf32>, vector<16x16xf32> -> vector<16x16xf32>
    %c0_23 = arith.constant 0 : index
    %c0_24 = arith.constant 0 : index
    %37 = vector.load %arg7[%c0_23, %c0_24] : memref<16x1xf32, #tpu.memory_space<vmem>>, vector<16x1xf32>
    %c0_25 = arith.constant 0 : index
    %c0_26 = arith.constant 0 : index
    %38 = vector.load %arg8[%c0_25, %c0_26] : memref<1x16xf32, #tpu.memory_space<vmem>>, vector<1x16xf32>
    %39 = vector.broadcast %37 : vector<16x1xf32> to vector<16x16xf32>
    %40 = vector.broadcast %38 : vector<1x16xf32> to vector<16x16xf32>
    %41 = arith.addf %39, %40 : vector<16x16xf32>
    %cst_27 = arith.constant 2.000000e+00 : f32
    %42 = vector.broadcast %cst_27 : f32 to vector<16x16xf32>
    %43 = arith.mulf %42, %36 : vector<16x16xf32>
    %44 = arith.subf %41, %43 : vector<16x16xf32>
    %c0_28 = arith.constant 0 : index
    %c0_29 = arith.constant 0 : index
    %45 = vector.load %arg10[%c0_28, %c0_29] : memref<16x16xf32, #tpu.memory_space<vmem>>, vector<16x16xf32>
    tpu.vector_store %arg10[%c0_28, %c0_29], %44 {strides = array<i32>} : memref<16x16xf32, #tpu.memory_space<vmem>>, vector<16x16xf32>,
    return
  }
  func.func @transform_0(%arg0: i32) -> (i32, i32) {
    %c0_i32 = arith.constant 0 : i32
    %c0_i32_0 = arith.constant 0 : i32
    return %arg0, %c0_i32 : i32, i32
  }
  func.func @transform_1(%arg0: i32) -> (i32, i32) {
    %c0_i32 = arith.constant 0 : i32
    %c0_i32_0 = arith.constant 0 : i32
    return %arg0, %c0_i32 : i32, i32
  }
  func.func @transform_2(%arg0: i32) -> (i32, i32) {
    %c0_i32 = arith.constant 0 : i32
    %c0_i32_0 = arith.constant 0 : i32
    %c0_i32_1 = arith.constant 0 : i32
    return %c0_i32, %c0_i32_0 : i32, i32
  }
  func.func @transform_3(%arg0: i32) -> (i32, i32) {
    %c0_i32 = arith.constant 0 : i32
    %c0_i32_0 = arith.constant 0 : i32
    return %arg0, %c0_i32 : i32, i32
  }
  func.func @transform_4(%arg0: i32) -> (i32, i32) {
    %c0_i32 = arith.constant 0 : i32
    %c0_i32_0 = arith.constant 0 : i32
    %c0_i32_1 = arith.constant 0 : i32
    return %c0_i32, %c0_i32_0 : i32, i32
  }
  func.func @transform_5(%arg0: i32) -> (i32, i32) {
    %c0_i32 = arith.constant 0 : i32
    %c0_i32_0 = arith.constant 0 : i32
    %c0_i32_1 = arith.constant 0 : i32
    return %c0_i32, %c0_i32_0 : i32, i32
  }
  func.func @transform_6(%arg0: i32) -> (i32, i32) {
    %c0_i32 = arith.constant 0 : i32
    %c0_i32_0 = arith.constant 0 : i32
    return %arg0, %c0_i32 : i32, i32
  }
  func.func @transform_7(%arg0: i32) -> (i32, i32) {
    %c0_i32 = arith.constant 0 : i32
    %c0_i32_0 = arith.constant 0 : i32
    %c0_i32_1 = arith.constant 0 : i32
    return %c0_i32, %c0_i32_0 : i32, i32
  }
  func.func @transform_8(%arg0: i32) -> (i32, i32) {
    %c0_i32 = arith.constant 0 : i32
    %c0_i32_0 = arith.constant 0 : i32
    return %arg0, %c0_i32 : i32, i32
  }
  func.func @transform_9(%arg0: i32) -> (i32, i32) {
    %c0_i32 = arith.constant 0 : i32
    %c0_i32_0 = arith.constant 0 : i32
    return %arg0, %c0_i32 : i32, i32
  }
}

module attributes {stable_mosaic.version = 11 : i64} {
  func.func @_theta_kernel(%arg0: i32, %arg1: memref<16x32xf32, #tpu.memory_space<vmem>>, %arg2: memref<32x16xf32, #tpu.memory_space<vmem>>, %arg3: memref<1x16xf32, #tpu.memory_space<vmem>>, %arg4: memref<16x2xf32, #tpu.memory_space<vmem>>, %arg5: memref<16x16xf32, #tpu.memory_space<vmem>>, %arg6: memref<16x2xf32, #tpu.memory_space<vmem>>, %arg7: memref<16x1xf32, #tpu.memory_space<vmem>>) attributes {dimension_semantics = [#tpu.dimension_semantics<parallel>], iteration_bounds = array<i64: 1>, scalar_prefetch = 0 : i64, scratch_operands = 0 : i64, tpu.core_type = #tpu.core_type<tc>, window_params = [{transform_indices = @transform_0, window_bounds = array<i64: 16, 32>}, {pipeline_mode = #tpu.pipeline_mode<synchronous>, transform_indices = @transform_1, window_bounds = array<i64: 32, 16>}, {pipeline_mode = #tpu.pipeline_mode<synchronous>, transform_indices = @transform_2, window_bounds = array<i64: 1, 16>}, {pipeline_mode = #tpu.pipeline_mode<synchronous>, transform_indices = @transform_3, window_bounds = array<i64: 16, 2>}, {transform_indices = @transform_4, window_bounds = array<i64: 16, 16>}, {transform_indices = @transform_5, window_bounds = array<i64: 16, 2>}, {transform_indices = @transform_6, window_bounds = array<i64: 16, 1>}]} {
    %c0 = arith.constant 0 : index
    %c0_0 = arith.constant 0 : index
    %0 = vector.load %arg1[%c0, %c0_0] : memref<16x32xf32, #tpu.memory_space<vmem>>, vector<16x32xf32>
    %c0_1 = arith.constant 0 : index
    %c0_2 = arith.constant 0 : index
    %1 = vector.load %arg2[%c0_1, %c0_2] : memref<32x16xf32, #tpu.memory_space<vmem>>, vector<32x16xf32>
    %cst = arith.constant dense<0.000000e+00> : vector<16x16xf32>
    %2 = tpu.matmul %0, %1, %cst {dimension_numbers = #tpu.dot_dimension_numbers<[1], [0], [0], [1], [0, 0, 1, 1], [], []>} : vector<16x32xf32>, vector<32x16xf32>, vector<16x16xf32> -> vector<16x16xf32>
    %c0_3 = arith.constant 0 : index
    %c0_4 = arith.constant 0 : index
    %3 = vector.load %arg3[%c0_3, %c0_4] : memref<1x16xf32, #tpu.memory_space<vmem>>, vector<1x16xf32>
    %4 = vector.broadcast %3 : vector<1x16xf32> to vector<16x16xf32>
    %5 = arith.addf %2, %4 : vector<16x16xf32>
    %c0_5 = arith.constant 0 : index
    %c0_6 = arith.constant 0 : index
    %6 = vector.load %arg5[%c0_5, %c0_6] : memref<16x16xf32, #tpu.memory_space<vmem>>, vector<16x16xf32>
    tpu.vector_store %arg5[%c0_5, %c0_6], %5 {strides = array<i32>} : memref<16x16xf32, #tpu.memory_space<vmem>>, vector<16x16xf32>,
    %c0_7 = arith.constant 0 : index
    %c0_8 = arith.constant 0 : index
    %7 = vector.load %arg4[%c0_7, %c0_8] : memref<16x2xf32, #tpu.memory_space<vmem>>, vector<16x2xf32>
    %cst_9 = arith.constant dense<0.000000e+00> : vector<16x2xf32>
    %8 = tpu.matmul %5, %7, %cst_9 {dimension_numbers = #tpu.dot_dimension_numbers<[1], [0], [0], [1], [0, 0, 1, 1], [], []>} : vector<16x16xf32>, vector<16x2xf32>, vector<16x2xf32> -> vector<16x2xf32>
    %c0_10 = arith.constant 0 : index
    %c0_11 = arith.constant 0 : index
    %9 = vector.load %arg6[%c0_10, %c0_11] : memref<16x2xf32, #tpu.memory_space<vmem>>, vector<16x2xf32>
    tpu.vector_store %arg6[%c0_10, %c0_11], %8 {strides = array<i32>} : memref<16x2xf32, #tpu.memory_space<vmem>>, vector<16x2xf32>,
    %10 = arith.mulf %5, %5 : vector<16x16xf32>
    %cst_12 = arith.constant dense<0.000000e+00> : vector<16xf32>
    %11 = vector.multi_reduction <add>, %10, %cst_12 [1] : vector<16x16xf32> to vector<16xf32>
    %12 = vector.shape_cast %11 : vector<16xf32> to vector<16x1xf32>
    %c0_13 = arith.constant 0 : index
    %c0_14 = arith.constant 0 : index
    %13 = vector.load %arg7[%c0_13, %c0_14] : memref<16x1xf32, #tpu.memory_space<vmem>>, vector<16x1xf32>
    tpu.vector_store %arg7[%c0_13, %c0_14], %12 {strides = array<i32>} : memref<16x1xf32, #tpu.memory_space<vmem>>, vector<16x1xf32>,
    return
  }
  func.func @transform_0(%arg0: i32) -> (i32, i32) {
    %c0_i32 = arith.constant 0 : i32
    %c0_i32_0 = arith.constant 0 : i32
    return %arg0, %c0_i32 : i32, i32
  }
  func.func @transform_1(%arg0: i32) -> (i32, i32) {
    %c0_i32 = arith.constant 0 : i32
    %c0_i32_0 = arith.constant 0 : i32
    %c0_i32_1 = arith.constant 0 : i32
    return %c0_i32, %c0_i32_0 : i32, i32
  }
  func.func @transform_2(%arg0: i32) -> (i32, i32) {
    %c0_i32 = arith.constant 0 : i32
    %c0_i32_0 = arith.constant 0 : i32
    %c0_i32_1 = arith.constant 0 : i32
    return %c0_i32, %c0_i32_0 : i32, i32
  }
  func.func @transform_3(%arg0: i32) -> (i32, i32) {
    %c0_i32 = arith.constant 0 : i32
    %c0_i32_0 = arith.constant 0 : i32
    %c0_i32_1 = arith.constant 0 : i32
    return %c0_i32, %c0_i32_0 : i32, i32
  }
  func.func @transform_4(%arg0: i32) -> (i32, i32) {
    %c0_i32 = arith.constant 0 : i32
    %c0_i32_0 = arith.constant 0 : i32
    return %arg0, %c0_i32 : i32, i32
  }
  func.func @transform_5(%arg0: i32) -> (i32, i32) {
    %c0_i32 = arith.constant 0 : i32
    %c0_i32_0 = arith.constant 0 : i32
    return %arg0, %c0_i32 : i32, i32
  }
  func.func @transform_6(%arg0: i32) -> (i32, i32) {
    %c0_i32 = arith.constant 0 : i32
    %c0_i32_0 = arith.constant 0 : i32
    return %arg0, %c0_i32 : i32, i32
  }
}

module attributes {stable_mosaic.version = 11 : i64} {
  func.func @_gcn_kernel(%arg0: i32, %arg1: memref<16x16xf32, #tpu.memory_space<vmem>>, %arg2: memref<16x32xf32, #tpu.memory_space<vmem>>, %arg3: memref<16x32xf32, #tpu.memory_space<vmem>>) attributes {dimension_semantics = [#tpu.dimension_semantics<parallel>], iteration_bounds = array<i64: 1>, scalar_prefetch = 0 : i64, scratch_operands = 0 : i64, tpu.core_type = #tpu.core_type<tc>, window_params = [{transform_indices = @transform_0, window_bounds = array<i64: 16, 16>}, {pipeline_mode = #tpu.pipeline_mode<synchronous>, transform_indices = @transform_1, window_bounds = array<i64: 16, 32>}, {transform_indices = @transform_2, window_bounds = array<i64: 16, 32>}]} {
    %c0 = arith.constant 0 : index
    %c0_0 = arith.constant 0 : index
    %0 = vector.load %arg1[%c0, %c0_0] : memref<16x16xf32, #tpu.memory_space<vmem>>, vector<16x16xf32>
    %c0_1 = arith.constant 0 : index
    %c0_2 = arith.constant 0 : index
    %1 = vector.load %arg2[%c0_1, %c0_2] : memref<16x32xf32, #tpu.memory_space<vmem>>, vector<16x32xf32>
    %cst = arith.constant dense<0.000000e+00> : vector<16x32xf32>
    %2 = tpu.matmul %0, %1, %cst {dimension_numbers = #tpu.dot_dimension_numbers<[1], [0], [0], [1], [0, 0, 1, 1], [], []>} : vector<16x16xf32>, vector<16x32xf32>, vector<16x32xf32> -> vector<16x32xf32>
    %cst_3 = arith.constant 0.000000e+00 : f32
    %3 = vector.broadcast %cst_3 : f32 to vector<16x32xf32>
    %4 = arith.cmpf ogt, %2, %3 : vector<16x32xf32>
    %cst_4 = arith.constant 0.000000e+00 : f32
    %5 = vector.broadcast %cst_4 : f32 to vector<16x32xf32>
    %6 = arith.minimumf %2, %5 : vector<16x32xf32>
    %7 = math.exp %6 : vector<16x32xf32>
    %cst_5 = arith.constant 1.000000e+00 : f32
    %8 = vector.broadcast %cst_5 : f32 to vector<16x32xf32>
    %9 = arith.subf %7, %8 : vector<16x32xf32>
    %10 = arith.select %4, %2, %9 : vector<16x32xi1>, vector<16x32xf32>
    %cst_6 = arith.constant 0.000000e+00 : f32
    %11 = vector.broadcast %cst_6 : f32 to vector<16x32xf32>
    %12 = arith.maximumf %10, %11 : vector<16x32xf32>
    %c0_7 = arith.constant 0 : index
    %c0_8 = arith.constant 0 : index
    %13 = vector.load %arg3[%c0_7, %c0_8] : memref<16x32xf32, #tpu.memory_space<vmem>>, vector<16x32xf32>
    tpu.vector_store %arg3[%c0_7, %c0_8], %12 {strides = array<i32>} : memref<16x32xf32, #tpu.memory_space<vmem>>, vector<16x32xf32>,
    return
  }
  func.func @transform_0(%arg0: i32) -> (i32, i32) {
    %c0_i32 = arith.constant 0 : i32
    %c0_i32_0 = arith.constant 0 : i32
    return %arg0, %c0_i32 : i32, i32
  }
  func.func @transform_1(%arg0: i32) -> (i32, i32) {
    %c0_i32 = arith.constant 0 : i32
    %c0_i32_0 = arith.constant 0 : i32
    %c0_i32_1 = arith.constant 0 : i32
    return %c0_i32, %c0_i32_0 : i32, i32
  }
  func.func @transform_2(%arg0: i32) -> (i32, i32) {
    %c0_i32 = arith.constant 0 : i32
    %c0_i32_0 = arith.constant 0 : i32
    return %arg0, %c0_i32 : i32, i32
  }
}

module attributes {stable_mosaic.version = 11 : i64} {
  func.func @_gcn_kernel(%arg0: i32, %arg1: memref<16x16xf32, #tpu.memory_space<vmem>>, %arg2: memref<16x16xf32, #tpu.memory_space<vmem>>, %arg3: memref<16x16xf32, #tpu.memory_space<vmem>>) attributes {dimension_semantics = [#tpu.dimension_semantics<parallel>], iteration_bounds = array<i64: 1>, scalar_prefetch = 0 : i64, scratch_operands = 0 : i64, tpu.core_type = #tpu.core_type<tc>, window_params = [{transform_indices = @transform_0, window_bounds = array<i64: 16, 16>}, {pipeline_mode = #tpu.pipeline_mode<synchronous>, transform_indices = @transform_1, window_bounds = array<i64: 16, 16>}, {transform_indices = @transform_2, window_bounds = array<i64: 16, 16>}]} {
    %c0 = arith.constant 0 : index
    %c0_0 = arith.constant 0 : index
    %0 = vector.load %arg1[%c0, %c0_0] : memref<16x16xf32, #tpu.memory_space<vmem>>, vector<16x16xf32>
    %c0_1 = arith.constant 0 : index
    %c0_2 = arith.constant 0 : index
    %1 = vector.load %arg2[%c0_1, %c0_2] : memref<16x16xf32, #tpu.memory_space<vmem>>, vector<16x16xf32>
    %cst = arith.constant dense<0.000000e+00> : vector<16x16xf32>
    %2 = tpu.matmul %0, %1, %cst {dimension_numbers = #tpu.dot_dimension_numbers<[1], [0], [0], [1], [0, 0, 1, 1], [], []>} : vector<16x16xf32>, vector<16x16xf32>, vector<16x16xf32> -> vector<16x16xf32>
    %cst_3 = arith.constant 0.000000e+00 : f32
    %3 = vector.broadcast %cst_3 : f32 to vector<16x16xf32>
    %4 = arith.cmpf ogt, %2, %3 : vector<16x16xf32>
    %cst_4 = arith.constant 0.000000e+00 : f32
    %5 = vector.broadcast %cst_4 : f32 to vector<16x16xf32>
    %6 = arith.minimumf %2, %5 : vector<16x16xf32>
    %7 = math.exp %6 : vector<16x16xf32>
    %cst_5 = arith.constant 1.000000e+00 : f32
    %8 = vector.broadcast %cst_5 : f32 to vector<16x16xf32>
    %9 = arith.subf %7, %8 : vector<16x16xf32>
    %10 = arith.select %4, %2, %9 : vector<16x16xi1>, vector<16x16xf32>
    %c0_6 = arith.constant 0 : index
    %c0_7 = arith.constant 0 : index
    %11 = vector.load %arg3[%c0_6, %c0_7] : memref<16x16xf32, #tpu.memory_space<vmem>>, vector<16x16xf32>
    tpu.vector_store %arg3[%c0_6, %c0_7], %10 {strides = array<i32>} : memref<16x16xf32, #tpu.memory_space<vmem>>, vector<16x16xf32>,
    return
  }
  func.func @transform_0(%arg0: i32) -> (i32, i32) {
    %c0_i32 = arith.constant 0 : i32
    %c0_i32_0 = arith.constant 0 : i32
    return %arg0, %c0_i32 : i32, i32
  }
  func.func @transform_1(%arg0: i32) -> (i32, i32) {
    %c0_i32 = arith.constant 0 : i32
    %c0_i32_0 = arith.constant 0 : i32
    %c0_i32_1 = arith.constant 0 : i32
    return %c0_i32, %c0_i32_0 : i32, i32
  }
  func.func @transform_2(%arg0: i32) -> (i32, i32) {
    %c0_i32 = arith.constant 0 : i32
    %c0_i32_0 = arith.constant 0 : i32
    return %arg0, %c0_i32 : i32, i32
  }
}

module attributes {stable_mosaic.version = 11 : i64} {
  func.func @_attn_dist_kernel(%arg0: i32, %arg1: memref<16x16xbf16, #tpu.memory_space<vmem>>, %arg2: memref<16x1xf32, #tpu.memory_space<vmem>>, %arg3: memref<1x16xf32, #tpu.memory_space<vmem>>, %arg4: memref<16x16xf32, #tpu.memory_space<vmem>>, %arg5: memref<16x16xf32, #tpu.memory_space<vmem>>, %arg6: memref<16x16xf32, #tpu.memory_space<vmem>>, %arg7: memref<16x1xf32, #tpu.memory_space<vmem>>, %arg8: memref<1x16xf32, #tpu.memory_space<vmem>>, %arg9: memref<16x16xf32, #tpu.memory_space<vmem>>, %arg10: memref<16x16xf32, #tpu.memory_space<vmem>>) attributes {dimension_semantics = [#tpu.dimension_semantics<parallel>], iteration_bounds = array<i64: 1>, scalar_prefetch = 0 : i64, scratch_operands = 0 : i64, tpu.core_type = #tpu.core_type<tc>, window_params = [{transform_indices = @transform_0, window_bounds = array<i64: 16, 16>}, {transform_indices = @transform_1, window_bounds = array<i64: 16, 1>}, {pipeline_mode = #tpu.pipeline_mode<synchronous>, transform_indices = @transform_2, window_bounds = array<i64: 1, 16>}, {transform_indices = @transform_3, window_bounds = array<i64: 16, 16>}, {pipeline_mode = #tpu.pipeline_mode<synchronous>, transform_indices = @transform_4, window_bounds = array<i64: 16, 16>}, {pipeline_mode = #tpu.pipeline_mode<synchronous>, transform_indices = @transform_5, window_bounds = array<i64: 16, 16>}, {transform_indices = @transform_6, window_bounds = array<i64: 16, 1>}, {pipeline_mode = #tpu.pipeline_mode<synchronous>, transform_indices = @transform_7, window_bounds = array<i64: 1, 16>}, {transform_indices = @transform_8, window_bounds = array<i64: 16, 16>}, {transform_indices = @transform_9, window_bounds = array<i64: 16, 16>}]} {
    %c0 = arith.constant 0 : index
    %c0_0 = arith.constant 0 : index
    %0 = vector.load %arg1[%c0, %c0_0] : memref<16x16xbf16, #tpu.memory_space<vmem>>, vector<16x16xbf16>
    %cst = arith.constant 0.000000e+00 : bf16
    %1 = vector.broadcast %cst : bf16 to vector<16x16xbf16>
    %2 = arith.cmpf ogt, %0, %1 : vector<16x16xbf16>
    %c0_1 = arith.constant 0 : index
    %c0_2 = arith.constant 0 : index
    %3 = vector.load %arg2[%c0_1, %c0_2] : memref<16x1xf32, #tpu.memory_space<vmem>>, vector<16x1xf32>
    %c0_3 = arith.constant 0 : index
    %c0_4 = arith.constant 0 : index
    %4 = vector.load %arg3[%c0_3, %c0_4] : memref<1x16xf32, #tpu.memory_space<vmem>>, vector<1x16xf32>
    %5 = vector.broadcast %3 : vector<16x1xf32> to vector<16x16xf32>
    %6 = vector.broadcast %4 : vector<1x16xf32> to vector<16x16xf32>
    %7 = arith.addf %5, %6 : vector<16x16xf32>
    %cst_5 = arith.constant 0.000000e+00 : f32
    %8 = vector.broadcast %cst_5 : f32 to vector<16x16xf32>
    %9 = arith.cmpf oge, %7, %8 : vector<16x16xf32>
    %cst_6 = arith.constant 2.000000e-01 : f32
    %10 = vector.broadcast %cst_6 : f32 to vector<16x16xf32>
    %11 = arith.mulf %10, %7 : vector<16x16xf32>
    %12 = arith.select %9, %7, %11 : vector<16x16xi1>, vector<16x16xf32>
    %cst_7 = arith.constant -1.000000e+30 : f32
    %13 = vector.broadcast %cst_7 : f32 to vector<16x16xf32>
    %14 = arith.select %2, %12, %13 : vector<16x16xi1>, vector<16x16xf32>
    %cst_8 = arith.constant dense<0xFF800000> : vector<16xf32>
    %15 = vector.multi_reduction <maximumf>, %14, %cst_8 [1] : vector<16x16xf32> to vector<16xf32>
    %16 = vector.shape_cast %15 : vector<16xf32> to vector<16x1xf32>
    %17 = vector.broadcast %16 : vector<16x1xf32> to vector<16x16xf32>
    %18 = arith.subf %14, %17 : vector<16x16xf32>
    %19 = math.exp %18 : vector<16x16xf32>
    %cst_9 = arith.constant 0.000000e+00 : f32
    %20 = vector.broadcast %cst_9 : f32 to vector<16x16xf32>
    %21 = arith.select %2, %19, %20 : vector<16x16xi1>, vector<16x16xf32>
    %cst_10 = arith.constant dense<0.000000e+00> : vector<16xf32>
    %22 = vector.multi_reduction <add>, %21, %cst_10 [1] : vector<16x16xf32> to vector<16xf32>
    %23 = vector.shape_cast %22 : vector<16xf32> to vector<16x1xf32>
    %c0_11 = arith.constant 0 : index
    %c0_12 = arith.constant 0 : index
    %24 = vector.load %arg5[%c0_11, %c0_12] : memref<16x16xf32, #tpu.memory_space<vmem>>, vector<16x16xf32>
    %cst_13 = arith.constant dense<0.000000e+00> : vector<16x16xf32>
    %25 = tpu.matmul %21, %24, %cst_13 {dimension_numbers = #tpu.dot_dimension_numbers<[1], [0], [0], [1], [0, 0, 1, 1], [], []>} : vector<16x16xf32>, vector<16x16xf32>, vector<16x16xf32> -> vector<16x16xf32>
    %cst_14 = arith.constant 0.000000e+00 : f32
    %26 = vector.broadcast %cst_14 : f32 to vector<16x1xf32>
    %27 = arith.cmpf ogt, %23, %26 : vector<16x1xf32>
    %cst_15 = arith.constant 1.000000e+00 : f32
    %28 = vector.broadcast %cst_15 : f32 to vector<16x1xf32>
    %29 = arith.select %27, %23, %28 : vector<16x1xi1>, vector<16x1xf32>
    %30 = tpu.reciprocal %29 : vector<16x1xf32> -> vector<16x1xf32>
    %31 = vector.broadcast %30 : vector<16x1xf32> to vector<16x16xf32>
    %32 = arith.mulf %25, %31 : vector<16x16xf32>
    %c0_16 = arith.constant 0 : index
    %c0_17 = arith.constant 0 : index
    %33 = vector.load %arg9[%c0_16, %c0_17] : memref<16x16xf32, #tpu.memory_space<vmem>>, vector<16x16xf32>
    tpu.vector_store %arg9[%c0_16, %c0_17], %32 {strides = array<i32>} : memref<16x16xf32, #tpu.memory_space<vmem>>, vector<16x16xf32>,
    %c0_18 = arith.constant 0 : index
    %c0_19 = arith.constant 0 : index
    %34 = vector.load %arg4[%c0_18, %c0_19] : memref<16x16xf32, #tpu.memory_space<vmem>>, vector<16x16xf32>
    %c0_20 = arith.constant 0 : index
    %c0_21 = arith.constant 0 : index
    %35 = vector.load %arg6[%c0_20, %c0_21] : memref<16x16xf32, #tpu.memory_space<vmem>>, vector<16x16xf32>
    %cst_22 = arith.constant dense<0.000000e+00> : vector<16x16xf32>
    %36 = tpu.matmul %34, %35, %cst_22 {dimension_numbers = #tpu.dot_dimension_numbers<[1], [0], [0], [1], [0, 0, 1, 1], [], []>} : vector<16x16xf32>, vector<16x16xf32>, vector<16x16xf32> -> vector<16x16xf32>
    %c0_23 = arith.constant 0 : index
    %c0_24 = arith.constant 0 : index
    %37 = vector.load %arg7[%c0_23, %c0_24] : memref<16x1xf32, #tpu.memory_space<vmem>>, vector<16x1xf32>
    %c0_25 = arith.constant 0 : index
    %c0_26 = arith.constant 0 : index
    %38 = vector.load %arg8[%c0_25, %c0_26] : memref<1x16xf32, #tpu.memory_space<vmem>>, vector<1x16xf32>
    %39 = vector.broadcast %37 : vector<16x1xf32> to vector<16x16xf32>
    %40 = vector.broadcast %38 : vector<1x16xf32> to vector<16x16xf32>
    %41 = arith.addf %39, %40 : vector<16x16xf32>
    %cst_27 = arith.constant 2.000000e+00 : f32
    %42 = vector.broadcast %cst_27 : f32 to vector<16x16xf32>
    %43 = arith.mulf %42, %36 : vector<16x16xf32>
    %44 = arith.subf %41, %43 : vector<16x16xf32>
    %c0_28 = arith.constant 0 : index
    %c0_29 = arith.constant 0 : index
    %45 = vector.load %arg10[%c0_28, %c0_29] : memref<16x16xf32, #tpu.memory_space<vmem>>, vector<16x16xf32>
    tpu.vector_store %arg10[%c0_28, %c0_29], %44 {strides = array<i32>} : memref<16x16xf32, #tpu.memory_space<vmem>>, vector<16x16xf32>,
    return
  }
  func.func @transform_0(%arg0: i32) -> (i32, i32) {
    %c0_i32 = arith.constant 0 : i32
    %c0_i32_0 = arith.constant 0 : i32
    return %arg0, %c0_i32 : i32, i32
  }
  func.func @transform_1(%arg0: i32) -> (i32, i32) {
    %c0_i32 = arith.constant 0 : i32
    %c0_i32_0 = arith.constant 0 : i32
    return %arg0, %c0_i32 : i32, i32
  }
  func.func @transform_2(%arg0: i32) -> (i32, i32) {
    %c0_i32 = arith.constant 0 : i32
    %c0_i32_0 = arith.constant 0 : i32
    %c0_i32_1 = arith.constant 0 : i32
    return %c0_i32, %c0_i32_0 : i32, i32
  }
  func.func @transform_3(%arg0: i32) -> (i32, i32) {
    %c0_i32 = arith.constant 0 : i32
    %c0_i32_0 = arith.constant 0 : i32
    return %arg0, %c0_i32 : i32, i32
  }
  func.func @transform_4(%arg0: i32) -> (i32, i32) {
    %c0_i32 = arith.constant 0 : i32
    %c0_i32_0 = arith.constant 0 : i32
    %c0_i32_1 = arith.constant 0 : i32
    return %c0_i32, %c0_i32_0 : i32, i32
  }
  func.func @transform_5(%arg0: i32) -> (i32, i32) {
    %c0_i32 = arith.constant 0 : i32
    %c0_i32_0 = arith.constant 0 : i32
    %c0_i32_1 = arith.constant 0 : i32
    return %c0_i32, %c0_i32_0 : i32, i32
  }
  func.func @transform_6(%arg0: i32) -> (i32, i32) {
    %c0_i32 = arith.constant 0 : i32
    %c0_i32_0 = arith.constant 0 : i32
    return %arg0, %c0_i32 : i32, i32
  }
  func.func @transform_7(%arg0: i32) -> (i32, i32) {
    %c0_i32 = arith.constant 0 : i32
    %c0_i32_0 = arith.constant 0 : i32
    %c0_i32_1 = arith.constant 0 : i32
    return %c0_i32, %c0_i32_0 : i32, i32
  }
  func.func @transform_8(%arg0: i32) -> (i32, i32) {
    %c0_i32 = arith.constant 0 : i32
    %c0_i32_0 = arith.constant 0 : i32
    return %arg0, %c0_i32 : i32, i32
  }
  func.func @transform_9(%arg0: i32) -> (i32, i32) {
    %c0_i32 = arith.constant 0 : i32
    %c0_i32_0 = arith.constant 0 : i32
    return %arg0, %c0_i32 : i32, i32
  }
}

module attributes {stable_mosaic.version = 11 : i64} {
  func.func @_readout_kernel(%arg0: memref<16x16xf32, #tpu.memory_space<vmem>>, %arg1: memref<16x1xf32, #tpu.memory_space<vmem>>, %arg2: memref<16x1xf32, #tpu.memory_space<vmem>>, %arg3: memref<1x1xf32, #tpu.memory_space<vmem>>, %arg4: memref<1x1xf32, #tpu.memory_space<vmem>>) attributes {dimension_semantics = [], scalar_prefetch = 0 : i64, scratch_operands = 0 : i64, tpu.core_type = #tpu.core_type<tc>} {
    %c0 = arith.constant 0 : index
    %c0_0 = arith.constant 0 : index
    %0 = vector.load %arg1[%c0, %c0_0] : memref<16x1xf32, #tpu.memory_space<vmem>>, vector<16x1xf32>
    %cst = arith.constant 0.000000e+00 : f32
    %1 = vector.broadcast %cst : f32 to vector<16x1xf32>
    %2 = arith.cmpf ogt, %0, %1 : vector<16x1xf32>
    %c0_1 = arith.constant 0 : index
    %c0_2 = arith.constant 0 : index
    %3 = vector.load %arg0[%c0_1, %c0_2] : memref<16x16xf32, #tpu.memory_space<vmem>>, vector<16x16xf32>
    %cst_3 = arith.constant -1.000000e+30 : f32
    %4 = vector.shape_cast %2 : vector<16x1xi1> to vector<16x1xi1>
    %5 = vector.broadcast %4 : vector<16x1xi1> to vector<16x16xi1>
    %6 = vector.broadcast %cst_3 : f32 to vector<16x16xf32>
    %7 = arith.select %5, %3, %6 : vector<16x16xi1>, vector<16x16xf32>
    %cst_4 = arith.constant dense<0xFF800000> : vector<16xf32>
    %8 = vector.multi_reduction <maximumf>, %7, %cst_4 [0] : vector<16x16xf32> to vector<16xf32>
    %9 = vector.shape_cast %8 : vector<16xf32> to vector<1x16xf32>
    %c0_5 = arith.constant 0 : index
    %c0_6 = arith.constant 0 : index
    %10 = vector.load %arg2[%c0_5, %c0_6] : memref<16x1xf32, #tpu.memory_space<vmem>>, vector<16x1xf32>
    %cst_7 = arith.constant dense<0.000000e+00> : vector<1x1xf32>
    %11 = tpu.matmul %9, %10, %cst_7 {dimension_numbers = #tpu.dot_dimension_numbers<[1], [0], [0], [1], [0, 0, 1, 1], [], []>} : vector<1x16xf32>, vector<16x1xf32>, vector<1x1xf32> -> vector<1x1xf32>
    %c0_8 = arith.constant 0 : index
    %c0_9 = arith.constant 0 : index
    %12 = vector.load %arg3[%c0_8, %c0_9] : memref<1x1xf32, #tpu.memory_space<vmem>>, vector<1x1xf32>
    %13 = arith.addf %11, %12 : vector<1x1xf32>
    %cst_10 = arith.constant 0.000000e+00 : f32
    %14 = vector.broadcast %cst_10 : f32 to vector<1x1xf32>
    %15 = arith.subf %14, %13 : vector<1x1xf32>
    %16 = math.exp %15 : vector<1x1xf32>
    %cst_11 = arith.constant 1.000000e+00 : f32
    %17 = vector.broadcast %cst_11 : f32 to vector<1x1xf32>
    %18 = arith.addf %17, %16 : vector<1x1xf32>
    %cst_12 = arith.constant 1.000000e+00 : f32
    %19 = vector.broadcast %cst_12 : f32 to vector<1x1xf32>
    %20 = arith.divf %19, %18 : vector<1x1xf32>
    %c0_13 = arith.constant 0 : index
    %c0_14 = arith.constant 0 : index
    %21 = vector.load %arg4[%c0_13, %c0_14] : memref<1x1xf32, #tpu.memory_space<vmem>>, vector<1x1xf32>
    tpu.vector_store %arg4[%c0_13, %c0_14], %20 {strides = array<i32>} : memref<1x1xf32, #tpu.memory_space<vmem>>, vector<1x1xf32>,
    return
  }
}

</mosaic_0001>

<llo_original>
// kernel: gat_hgcn_forward.7
$region0: #{gat_hgcn_forward.7}
  #allocation0 [shape = 'u32[]', space=smem, size = 0x4, offset = 0x4, fixed_abs, tag = 'smem constant byte address 0x4 - core index']
  #allocation1 [shape = 'u32[144,128]{1,0:T(1,128)}', space=vmem, size = 0x12000, scoped, tag = 'internal scratch']
  %s0 = inlined_call_operand.vmem [shape: f32[16,8], index: 0, kind: input, shape index: {}]
  %s1 = inlined_call_operand.vmem [shape: f32[8,32], index: 1, kind: input, shape index: {}]
  %s2 = inlined_call_operand.vmem [shape: f32[1,32], index: 2, kind: input, shape index: {}]
  %s3 = inlined_call_operand.vmem [shape: f32[32,2], index: 3, kind: input, shape index: {}]
  %s4 = inlined_call_operand.vmem [shape: f32[16,32], index: 4, kind: output, shape index: {0}]
  %s5 = inlined_call_operand.vmem [shape: f32[16,2], index: 5, kind: output, shape index: {1}]
  %s6 = inlined_call_operand.vmem [shape: f32[16,1], index: 6, kind: output, shape index: {2}]
  %7 = xla_tuple %s4, %s5, %s6
  %s8 = sld [smem:[#allocation0]]
  $region42: #{gat_hgcn_forward.7} parent=0
    _
  %s10 = ssub.s32 1, %s8
  %s11 = scalar_select 0, %s10, %s8
  // Predicated region
  $region2: #{gat_hgcn_forward.7} parent=0 // pred_check
    _
  $region3: #{gat_hgcn_forward.7} parent=0 // pred_check_branch
    %13 = sbr.rel (0) target = $region5
  $region4: #{gat_hgcn_forward.7} parent=0 // pred_region
    _
  $region5: #{gat_hgcn_forward.7} parent=0 // pred_fallthru
    _
  // Predicated region
  $region6: #{gat_hgcn_forward.7} parent=0 // pred_check
    _
  $region7: #{gat_hgcn_forward.7} parent=0 // pred_check_branch
    %15 = sbr.rel (0) target = $region9
  $region8: #{gat_hgcn_forward.7} parent=0 // pred_region
    _
  $region9: #{gat_hgcn_forward.7} parent=0 // pred_fallthru
    _
  // Predicated region
  $region10: #{gat_hgcn_forward.7} parent=0 // pred_check
    _
  $region11: #{gat_hgcn_forward.7} parent=0 // pred_check_branch
    %17 = sbr.rel (0) target = $region13
  $region12: #{gat_hgcn_forward.7} parent=0 // pred_region
    _
  $region13: #{gat_hgcn_forward.7} parent=0 // pred_fallthru
    _
  // Predicated region
  $region14: #{gat_hgcn_forward.7} parent=0 // pred_check
    _
  $region15: #{gat_hgcn_forward.7} parent=0 // pred_check_branch
    %19 = sbr.rel (0) target = $region17
  $region16: #{gat_hgcn_forward.7} parent=0 // pred_region
    _
  $region17: #{gat_hgcn_forward.7} parent=0 // pred_fallthru
    _
  %v20 = vld [vmem:[%s0] sm:$0xff]
  %v21 = vld [vmem:[%s0 + $0x8] sm:$0xff]
  %v22 = vld [vmem:[%s1] sm:$0xff]
  %v23 = vld [vmem:[%s2] sm:$0x1]
  %v25 = vlaneseq
  %v26 = vshrl.u32 %v25, 7
  %v27 = vsub.s32 0, %v26
  %v28 = vrot.slane %v23, %v27
  %vm30 = vcmask 64512
  %v32 = vsel %vm30, %v20, 0
  %v35 = vsel %vm30, %v21, 0
  %37 = vmatprep.subr.mxu0 0.0
  %38 = vmatpush1.msra.mxu0 %v22
  %39 = vmatprep.subr.mxu0 0.0
  %40 = vmatpush1.msra.mxu0 0.0
  %41 = vmatprep.subr.mxu0 0.0
  %42 = vmatpush1.msra.mxu0 0.0
  %43 = vmatprep.subr.mxu0 0.0
  %44 = vmatpush1.msra.mxu0 0.0
  %45 = vmatprep.subr.mxu0 0.0
  %46 = vmatpush1.msra.mxu0 0.0
  %47 = vmatprep.subr.mxu0 0.0
  %48 = vmatpush1.msra.mxu0 0.0
  %49 = vmatprep.subr.mxu0 0.0
  %50 = vmatpush1.msra.mxu0 0.0
  %51 = vmatprep.subr.mxu0 0.0
  %52 = vmatpush1.msra.mxu0 0.0
  %53 = vmatprep.subr.mxu0 0.0
  %54 = vmatpush1.msra.mxu0 0.0
  %55 = vmatprep.subr.mxu0 0.0
  %56 = vmatpush1.msra.mxu0 0.0
  %57 = vmatprep.subr.mxu0 0.0
  %58 = vmatpush1.msra.mxu0 0.0
  %59 = vmatprep.subr.mxu0 0.0
  %60 = vmatpush1.msra.mxu0 0.0
  %61 = vmatprep.subr.mxu0 0.0
  %62 = vmatpush1.msra.mxu0 0.0
  %63 = vmatprep.subr.mxu0 0.0
  %64 = vmatpush1.msra.mxu0 0.0
  %65 = vmatprep.subr.mxu0 0.0
  %66 = vmatpush1.msra.mxu0 0.0
  %67 = vmatprep.subr.mxu0 0.0
  %68 = vmatpush1.msra.mxu0 0.0
  %69 = vmatprep.subr.mxu0 0.0
  %70 = vmatpush1.msra.mxu0 0.0
  %71 = vmatprep.subr.mxu0 0.0
  %72 = vmatpush1.msra.mxu0 0.0
  %73 = vmatprep.subr.mxu0 0.0
  %74 = vmatpush1.msra.mxu0 0.0
  %75 = vmatprep.subr.mxu0 0.0
  %76 = vmatpush1.msra.mxu0 0.0
  %77 = vmatprep.subr.mxu0 0.0
  %78 = vmatpush1.msra.mxu0 0.0
  %79 = vmatprep.subr.mxu0 0.0
  %80 = vmatpush1.msra.mxu0 0.0
  %81 = vmatprep.subr.mxu0 0.0
  %82 = vmatpush1.msra.mxu0 0.0
  %83 = vmatprep.subr.mxu0 0.0
  %84 = vmatpush1.msra.mxu0 0.0
  %85 = vmatprep.subr.mxu0 0.0
  %86 = vmatpush1.msra.mxu0 0.0
  %87 = vmatprep.subr.mxu0 0.0
  %88 = vmatpush1.msra.mxu0 0.0
  %89 = vmatprep.subr.mxu0 0.0
  %90 = vmatpush1.msra.mxu0 0.0
  %91 = vmatprep.subr.mxu0 0.0
  %92 = vmatpush1.msra.mxu0 0.0
  %93 = vmatprep.subr.mxu0 0.0
  %94 = vmatpush1.msra.mxu0 0.0
  %95 = vmatprep.subr.mxu0 0.0
  %96 = vmatpush1.msra.mxu0 0.0
  %97 = vmatprep.subr.mxu0 0.0
  %98 = vmatpush1.msra.mxu0 0.0
  %99 = vmatprep.subr.mxu0 0.0
  %100 = vmatpush1.msra.mxu0 0.0
  %101 = vmatprep.mubr.f32.mxu0 0.0
  %102 = vmatmul.mubr.f32.gmra.mrb[0].mxu0 %v32
  %v103 = vpop.f32.mrb[0].mxu0
  %v104 = vadd.f32 %v28, %v103
  %v105 = vpop.f32.mrb[0].mxu0
  %106 = vmatprep.mubr.f32.mxu0 0.0
  %107 = vmatmul.mubr.f32.gmra.mrb[0].mxu0 %v35
  %v108 = vpop.f32.mrb[0].mxu0
  %v109 = vadd.f32 %v28, %v108
  %v110 = vpop.f32.mrb[0].mxu0
  %111 = vdwg.mxu0
  %vm112 = vcmask 261120
  %113 = vst.msk [vmem:[%s4] sm:$0xff] %vm112, %v104
  %114 = vst.msk [vmem:[%s4 + $0x8] sm:$0xff] %vm112, %v109
  %v115 = vld [vmem:[%s3] sm:$0xff]
  %v116 = vld [vmem:[%s3 + $0x8] sm:$0xff]
  %v117 = vld [vmem:[%s3 + $0x10] sm:$0xff]
  %v118 = vld [vmem:[%s3 + $0x18] sm:$0xff]
  %v120 = vsel %vm112, %v104, 0
  %v123 = vsel %vm112, %v109, 0
  %125 = vmatprep.subr.mxu0 0.0
  %126 = vmatpush1.msra.mxu0 %v115
  %127 = vmatprep.subr.mxu0 0.0
  %128 = vmatpush1.msra.mxu0 %v116
  %129 = vmatprep.subr.mxu0 0.0
  %130 = vmatpush1.msra.mxu0 %v117
  %131 = vmatprep.subr.mxu0 0.0
  %132 = vmatpush1.msra.mxu0 %v118
  %133 = vmatprep.subr.mxu0 0.0
  %134 = vmatpush1.msra.mxu0 0.0
  %135 = vmatprep.subr.mxu0 0.0
  %136 = vmatpush1.msra.mxu0 0.0
  %137 = vmatprep.subr.mxu0 0.0
  %138 = vmatpush1.msra.mxu0 0.0
  %139 = vmatprep.subr.mxu0 0.0
  %140 = vmatpush1.msra.mxu0 0.0
  %141 = vmatprep.subr.mxu0 0.0
  %142 = vmatpush1.msra.mxu0 0.0
  %143 = vmatprep.subr.mxu0 0.0
  %144 = vmatpush1.msra.mxu0 0.0
  %145 = vmatprep.subr.mxu0 0.0
  %146 = vmatpush1.msra.mxu0 0.0
  %147 = vmatprep.subr.mxu0 0.0
  %148 = vmatpush1.msra.mxu0 0.0
  %149 = vmatprep.subr.mxu0 0.0
  %150 = vmatpush1.msra.mxu0 0.0
  %151 = vmatprep.subr.mxu0 0.0
  %152 = vmatpush1.msra.mxu0 0.0
  %153 = vmatprep.subr.mxu0 0.0
  %154 = vmatpush1.msra.mxu0 0.0
  %155 = vmatprep.subr.mxu0 0.0
  %156 = vmatpush1.msra.mxu0 0.0
  %157 = vmatprep.subr.mxu0 0.0
  %158 = vmatpush1.msra.mxu0 0.0
  %159 = vmatprep.subr.mxu0 0.0
  %160 = vmatpush1.msra.mxu0 0.0
  %161 = vmatprep.subr.mxu0 0.0
  %162 = vmatpush1.msra.mxu0 0.0
  %163 = vmatprep.subr.mxu0 0.0
  %164 = vmatpush1.msra.mxu0 0.0
  %165 = vmatprep.subr.mxu0 0.0
  %166 = vmatpush1.msra.mxu0 0.0
  %167 = vmatprep.subr.mxu0 0.0
  %168 = vmatpush1.msra.mxu0 0.0
  %169 = vmatprep.subr.mxu0 0.0
  %170 = vmatpush1.msra.mxu0 0.0
  %171 = vmatprep.subr.mxu0 0.0
  %172 = vmatpush1.msra.mxu0 0.0
  %173 = vmatprep.subr.mxu0 0.0
  %174 = vmatpush1.msra.mxu0 0.0
  %175 = vmatprep.subr.mxu0 0.0
  %176 = vmatpush1.msra.mxu0 0.0
  %177 = vmatprep.subr.mxu0 0.0
  %178 = vmatpush1.msra.mxu0 0.0
  %179 = vmatprep.subr.mxu0 0.0
  %180 = vmatpush1.msra.mxu0 0.0
  %181 = vmatprep.subr.mxu0 0.0
  %182 = vmatpush1.msra.mxu0 0.0
  %183 = vmatprep.subr.mxu0 0.0
  %184 = vmatpush1.msra.mxu0 0.0
  %185 = vmatprep.subr.mxu0 0.0
  %186 = vmatpush1.msra.mxu0 0.0
  %187 = vmatprep.subr.mxu0 0.0
  %188 = vmatpush1.msra.mxu0 0.0
  %189 = vmatprep.mubr.f32.mxu0 0.0
  %190 = vmatmul.mubr.f32.gmra.mrb[0].mxu0 %v120
  %v191 = vpop.f32.mrb[0].mxu0
  %v192 = vadd.f32 0.0, %v191
  %v193 = vpop.f32.mrb[0].mxu0
  %194 = vmatprep.mubr.f32.mxu0 0.0
  %195 = vmatmul.mubr.f32.gmra.mrb[0].mxu0 %v123
  %v196 = vpop.f32.mrb[0].mxu0
  %v197 = vadd.f32 0.0, %v196
  %v198 = vpop.f32.mrb[0].mxu0
  %199 = vdwg.mxu0
  %vm200 = vcmask 15360
  %201 = vst.msk [vmem:[%s5] sm:$0xff] %vm200, %v192
  %202 = vst.msk [vmem:[%s5 + $0x8] sm:$0xff] %vm200, %v197
  %v203 = vmul.f32 %v104, %v104
  %v204 = vmul.f32 %v109, %v109
  %v205 = vsel %vm112, %v203, 0.0
  %206 = vadd.xlane.f32.xlu0 %v205
  %v207 = vpop.xlane.xlu0 %206
  %v208 = vsel %vm112, %v204, 0.0
  %209 = vadd.xlane.f32.xlu0 %v208
  %v210 = vpop.xlane.xlu0 %209
  %vm211 = vcmask 7168
  %212 = vst.msk [vmem:[%s6] sm:$0xff] %vm211, %v207
  %213 = vst.msk [vmem:[%s6 + $0x8] sm:$0xff] %vm211, %v210
  // Predicated region
  $region18: #{gat_hgcn_forward.7} parent=0 // pred_check
    _
  $region19: #{gat_hgcn_forward.7} parent=0 // pred_check_branch
    %215 = sbr.rel (0) target = $region21
  $region20: #{gat_hgcn_forward.7} parent=0 // pred_region
    _
  $region21: #{gat_hgcn_forward.7} parent=0 // pred_fallthru
    _
  // Predicated region
  $region22: #{gat_hgcn_forward.7} parent=0 // pred_check
    _
  $region23: #{gat_hgcn_forward.7} parent=0 // pred_check_branch
    %217 = sbr.rel (0) target = $region25
  $region24: #{gat_hgcn_forward.7} parent=0 // pred_region
    _
  $region25: #{gat_hgcn_forward.7} parent=0 // pred_fallthru
    _
  // Predicated region
  $region26: #{gat_hgcn_forward.7} parent=0 // pred_check
    _
  $region27: #{gat_hgcn_forward.7} parent=0 // pred_check_branch
    %219 = sbr.rel (0) target = $region29
  $region28: #{gat_hgcn_forward.7} parent=0 // pred_region
    _
  $region29: #{gat_hgcn_forward.7} parent=0 // pred_fallthru
    _
  // Predicated region
  $region30: #{gat_hgcn_forward.7} parent=0 // pred_check
    _
  $region31: #{gat_hgcn_forward.7} parent=0 // pred_check_branch
    %221 = sbr.rel (0) target = $region33
  $region32: #{gat_hgcn_forward.7} parent=0 // pred_region
    _
  $region33: #{gat_hgcn_forward.7} parent=0 // pred_fallthru
    _
  // Predicated region
  $region34: #{gat_hgcn_forward.7} parent=0 // pred_check
    _
  $region35: #{gat_hgcn_forward.7} parent=0 // pred_check_branch
    %223 = sbr.rel (0) target = $region37
  $region36: #{gat_hgcn_forward.7} parent=0 // pred_region
    _
  $region37: #{gat_hgcn_forward.7} parent=0 // pred_fallthru
    _
  // Predicated region
  $region38: #{gat_hgcn_forward.7} parent=0 // pred_check
    _
  $region39: #{gat_hgcn_forward.7} parent=0 // pred_check_branch
    %225 = sbr.rel (0) target = $region41
  $region40: #{gat_hgcn_forward.7} parent=0 // pred_region
    _
  $region41: #{gat_hgcn_forward.7} parent=0 // pred_fallthru
    _

// kernel: gat_hgcn_forward.8
$region0: #{gat_hgcn_forward.8}
  #allocation0 [shape = 'u32[]', space=smem, size = 0x4, offset = 0x4, fixed_abs, tag = 'smem constant byte address 0x4 - core index']
  #allocation1 [shape = 'u32[144,128]{1,0:T(1,128)}', space=vmem, size = 0x12000, scoped, tag = 'internal scratch']
  %s0 = inlined_call_operand.vmem [shape: bf16[16,16], index: 0, kind: input, shape index: {}]
  %s1 = inlined_call_operand.vmem [shape: f32[16,1], index: 1, kind: input, shape index: {}]
  %s2 = inlined_call_operand.vmem [shape: f32[1,16], index: 2, kind: input, shape index: {}]
  %s3 = inlined_call_operand.vmem [shape: f32[16,32], index: 3, kind: input, shape index: {}, may-alias: {3,4}]
  %s4 = inlined_call_operand.vmem [shape: f32[16,32], index: 4, kind: input, shape index: {}, may-alias: {3,4}]
  %s5 = inlined_call_operand.vmem [shape: f32[32,16], index: 5, kind: input, shape index: {}]
  %s6 = inlined_call_operand.vmem [shape: f32[16,1], index: 6, kind: input, shape index: {}]
  %s7 = inlined_call_operand.vmem [shape: f32[1,16], index: 7, kind: input, shape index: {}]
  %s8 = inlined_call_operand.vmem [shape: f32[16,32], index: 8, kind: output, shape index: {0}]
  %s9 = inlined_call_operand.vmem [shape: f32[16,16], index: 9, kind: output, shape index: {1}]
  %10 = xla_tuple %s8, %s9
  %s11 = sld [smem:[#allocation0]]
  $region50: #{gat_hgcn_forward.8} parent=0
    _
  %s13 = ssub.s32 1, %s11
  %s14 = scalar_select 0, %s13, %s11
  // Predicated region
  $region2: #{gat_hgcn_forward.8} parent=0 // pred_check
    _
  $region3: #{gat_hgcn_forward.8} parent=0 // pred_check_branch
    %16 = sbr.rel (0) target = $region5
  $region4: #{gat_hgcn_forward.8} parent=0 // pred_region
    _
  $region5: #{gat_hgcn_forward.8} parent=0 // pred_fallthru
    _
  // Predicated region
  $region6: #{gat_hgcn_forward.8} parent=0 // pred_check
    _
  $region7: #{gat_hgcn_forward.8} parent=0 // pred_check_branch
    %18 = sbr.rel (0) target = $region9
  $region8: #{gat_hgcn_forward.8} parent=0 // pred_region
    _
  $region9: #{gat_hgcn_forward.8} parent=0 // pred_fallthru
    _
  // Predicated region
  $region10: #{gat_hgcn_forward.8} parent=0 // pred_check
    _
  $region11: #{gat_hgcn_forward.8} parent=0 // pred_check_branch
    %20 = sbr.rel (0) target = $region13
  $region12: #{gat_hgcn_forward.8} parent=0 // pred_region
    _
  $region13: #{gat_hgcn_forward.8} parent=0 // pred_fallthru
    _
  // Predicated region
  $region14: #{gat_hgcn_forward.8} parent=0 // pred_check
    _
  $region15: #{gat_hgcn_forward.8} parent=0 // pred_check_branch
    %22 = sbr.rel (0) target = $region17
  $region16: #{gat_hgcn_forward.8} parent=0 // pred_region
    _
  $region17: #{gat_hgcn_forward.8} parent=0 // pred_fallthru
    _
  // Predicated region
  $region18: #{gat_hgcn_forward.8} parent=0 // pred_check
    _
  $region19: #{gat_hgcn_forward.8} parent=0 // pred_check_branch
    %24 = sbr.rel (0) target = $region21
  $region20: #{gat_hgcn_forward.8} parent=0 // pred_region
    _
  $region21: #{gat_hgcn_forward.8} parent=0 // pred_fallthru
    _
  // Predicated region
  $region22: #{gat_hgcn_forward.8} parent=0 // pred_check
    _
  $region23: #{gat_hgcn_forward.8} parent=0 // pred_check_branch
    %26 = sbr.rel (0) target = $region25
  $region24: #{gat_hgcn_forward.8} parent=0 // pred_region
    _
  $region25: #{gat_hgcn_forward.8} parent=0 // pred_fallthru
    _
  // Predicated region
  $region26: #{gat_hgcn_forward.8} parent=0 // pred_check
    _
  $region27: #{gat_hgcn_forward.8} parent=0 // pred_check_branch
    %28 = sbr.rel (0) target = $region29
  $region28: #{gat_hgcn_forward.8} parent=0 // pred_region
    _
  $region29: #{gat_hgcn_forward.8} parent=0 // pred_fallthru
    _
  // Predicated region
  $region30: #{gat_hgcn_forward.8} parent=0 // pred_check
    _
  $region31: #{gat_hgcn_forward.8} parent=0 // pred_check_branch
    %30 = sbr.rel (0) target = $region33
  $region32: #{gat_hgcn_forward.8} parent=0 // pred_region
    _
  $region33: #{gat_hgcn_forward.8} parent=0 // pred_fallthru
    _
  %v34 = vld [vmem:[%s0] sm:$0xf]
  %v35 = vld [vmem:[%s0 + $0x4] sm:$0xf]
  %vm36 = vcmp.gt.bf16.partialorder %v34, 0
  %vm37 = vcmp.gt.bf16.partialorder %v35, 0
  %v38 = vld [vmem:[%s1] sm:$0xff]
  %v39 = vld [vmem:[%s1 + $0x8] sm:$0xff]
  %v40 = vld [vmem:[%s2] sm:$0x1]
  %42 = vset.pattern.permute.xlu0 0
  %43 = vperm.xlu0 %42, %v38
  %v44 = vpop.permute.xlu0 %43
  %47 = vset.pattern.permute.xlu0 0
  %48 = vperm.xlu0 %47, %v39
  %v49 = vpop.permute.xlu0 %48
  %v52 = vlaneseq
  %v53 = vshrl.u32 %v52, 7
  %v54 = vsub.s32 0, %v53
  %v55 = vrot.slane %v40, %v54
  %v57 = vadd.f32 %v44, %v55
  %v58 = vadd.f32 %v49, %v55
  %vm59 = vcmp.ge.f32.partialorder %v57, 0.0
  %vm60 = vcmp.ge.f32.partialorder %v58, 0.0
  %v61 = vmul.f32 %v57, 0.2
  %v62 = vmul.f32 %v58, 0.2
  %v63 = vsel %vm59, %v57, %v61
  %v64 = vsel %vm60, %v58, %v62
  %v65 = vsel %vm36, 65537, 0
  %v66 = vsel %vm37, 65537, 0
  %v67 = vunpack.c.l.b16 %v65
  %v68 = vunpack.c.l.b16 %v66
  %vm69 = vcmp.ne.s32.totalorder %v67, 0
  %vm70 = vcmp.ne.s32.totalorder %v68, 0
  %v71 = vsel %vm69, %v63, -1e+30
  %v72 = vsel %vm70, %v64, -1e+30
  %vm73 = vcmask 130048
  %v74 = vsel %vm73, %v71, -inf
  %75 = vmax.xlane.f32.xlu0 %v74
  %v76 = vpop.xlane.xlu0 %75
  %v77 = vsel %vm73, %v72, -inf
  %78 = vmax.xlane.f32.xlu0 %v77
  %v79 = vpop.xlane.xlu0 %78
  %v80 = vsub.f32 %v71, %v76
  %v81 = vsub.f32 %v72, %v79
  %v82 = vmul.f32 %v80, 1.442695
  %v83 = vpow.pop %v82
  %v84 = vmul.f32 %v81, 1.442695
  %v85 = vpow.pop %v84
  %v86 = vsel %vm69, %v83, 0.0
  %v87 = vsel %vm70, %v85, 0.0
  %v88 = vsel %vm73, %v86, 0.0
  %89 = vadd.xlane.f32.xlu0 %v88
  %v90 = vpop.xlane.xlu0 %89
  %v91 = vsel %vm73, %v87, 0.0
  %92 = vadd.xlane.f32.xlu0 %v91
  %v93 = vpop.xlane.xlu0 %92
  %v94 = vld [vmem:[%s4] sm:$0xff]
  %v95 = vld [vmem:[%s4 + $0x8] sm:$0xff]
  %v97 = vsel %vm73, %v86, 0
  %v100 = vsel %vm73, %v87, 0
  %102 = vmatprep.subr.mxu0 0.0
  %103 = vmatpush1.msra.mxu0 %v94
  %104 = vmatprep.subr.mxu0 0.0
  %105 = vmatpush1.msra.mxu0 %v95
  %106 = vmatprep.subr.mxu0 0.0
  %107 = vmatpush1.msra.mxu0 0.0
  %108 = vmatprep.subr.mxu0 0.0
  %109 = vmatpush1.msra.mxu0 0.0
  %110 = vmatprep.subr.mxu0 0.0
  %111 = vmatpush1.msra.mxu0 0.0
  %112 = vmatprep.subr.mxu0 0.0
  %113 = vmatpush1.msra.mxu0 0.0
  %114 = vmatprep.subr.mxu0 0.0
  %115 = vmatpush1.msra.mxu0 0.0
  %116 = vmatprep.subr.mxu0 0.0
  %117 = vmatpush1.msra.mxu0 0.0
  %118 = vmatprep.subr.mxu0 0.0
  %119 = vmatpush1.msra.mxu0 0.0
  %120 = vmatprep.subr.mxu0 0.0
  %121 = vmatpush1.msra.mxu0 0.0
  %122 = vmatprep.subr.mxu0 0.0
  %123 = vmatpush1.msra.mxu0 0.0
  %124 = vmatprep.subr.mxu0 0.0
  %125 = vmatpush1.msra.mxu0 0.0
  %126 = vmatprep.subr.mxu0 0.0
  %127 = vmatpush1.msra.mxu0 0.0
  %128 = vmatprep.subr.mxu0 0.0
  %129 = vmatpush1.msra.mxu0 0.0
  %130 = vmatprep.subr.mxu0 0.0
  %131 = vmatpush1.msra.mxu0 0.0
  %132 = vmatprep.subr.mxu0 0.0
  %133 = vmatpush1.msra.mxu0 0.0
  %134 = vmatprep.subr.mxu0 0.0
  %135 = vmatpush1.msra.mxu0 0.0
  %136 = vmatprep.subr.mxu0 0.0
  %137 = vmatpush1.msra.mxu0 0.0
  %138 = vmatprep.subr.mxu0 0.0
  %139 = vmatpush1.msra.mxu0 0.0
  %140 = vmatprep.subr.mxu0 0.0
  %141 = vmatpush1.msra.mxu0 0.0
  %142 = vmatprep.subr.mxu0 0.0
  %143 = vmatpush1.msra.mxu0 0.0
  %144 = vmatprep.subr.mxu0 0.0
  %145 = vmatpush1.msra.mxu0 0.0
  %146 = vmatprep.subr.mxu0 0.0
  %147 = vmatpush1.msra.mxu0 0.0
  %148 = vmatprep.subr.mxu0 0.0
  %149 = vmatpush1.msra.mxu0 0.0
  %150 = vmatprep.subr.mxu0 0.0
  %151 = vmatpush1.msra.mxu0 0.0
  %152 = vmatprep.subr.mxu0 0.0
  %153 = vmatpush1.msra.mxu0 0.0
  %154 = vmatprep.subr.mxu0 0.0
  %155 = vmatpush1.msra.mxu0 0.0
  %156 = vmatprep.subr.mxu0 0.0
  %157 = vmatpush1.msra.mxu0 0.0
  %158 = vmatprep.subr.mxu0 0.0
  %159 = vmatpush1.msra.mxu0 0.0
  %160 = vmatprep.subr.mxu0 0.0
  %161 = vmatpush1.msra.mxu0 0.0
  %162 = vmatprep.subr.mxu0 0.0
  %163 = vmatpush1.msra.mxu0 0.0
  %164 = vmatprep.subr.mxu0 0.0
  %165 = vmatpush1.msra.mxu0 0.0
  %166 = vmatprep.mubr.f32.mxu0 0.0
  %167 = vmatmul.mubr.f32.gmra.mrb[0].mxu0 %v97
  %v168 = vpop.f32.mrb[0].mxu0
  %v169 = vadd.f32 0.0, %v168
  %v170 = vpop.f32.mrb[0].mxu0
  %171 = vmatprep.mubr.f32.mxu0 0.0
  %172 = vmatmul.mubr.f32.gmra.mrb[0].mxu0 %v100
  %v173 = vpop.f32.mrb[0].mxu0
  %v174 = vadd.f32 0.0, %v173
  %v175 = vpop.f32.mrb[0].mxu0
  %176 = vdwg.mxu0
  %vm177 = vcmp.gt.f32.partialorder %v90, 0.0
  %vm178 = vcmp.gt.f32.partialorder %v93, 0.0
  %v179 = vsel %vm177, %v90, 1.0
  %v180 = vsel %vm178, %v93, 1.0
  %v181 = vrcp.pop %v179
  %v182 = vrcp.pop %v180
  %v183 = vmul.f32 %v169, %v181
  %v184 = vmul.f32 %v174, %v182
  %vm185 = vcmask 261120
  %186 = vst.msk [vmem:[%s8] sm:$0xff] %vm185, %v183
  %187 = vst.msk [vmem:[%s8 + $0x8] sm:$0xff] %vm185, %v184
  %v188 = vld [vmem:[%s3] sm:$0xff]
  %v189 = vld [vmem:[%s3 + $0x8] sm:$0xff]
  %v190 = vld [vmem:[%s5] sm:$0xff]
  %v191 = vld [vmem:[%s5 + $0x8] sm:$0xff]
  %v192 = vld [vmem:[%s5 + $0x10] sm:$0xff]
  %v193 = vld [vmem:[%s5 + $0x18] sm:$0xff]
  %v195 = vsel %vm185, %v188, 0
  %v198 = vsel %vm185, %v189, 0
  %200 = vmatprep.subr.mxu0 0.0
  %201 = vmatpush1.msra.mxu0 %v190
  %202 = vmatprep.subr.mxu0 0.0
  %203 = vmatpush1.msra.mxu0 %v191
  %204 = vmatprep.subr.mxu0 0.0
  %205 = vmatpush1.msra.mxu0 %v192
  %206 = vmatprep.subr.mxu0 0.0
  %207 = vmatpush1.msra.mxu0 %v193
  %208 = vmatprep.subr.mxu0 0.0
  %209 = vmatpush1.msra.mxu0 0.0
  %210 = vmatprep.subr.mxu0 0.0
  %211 = vmatpush1.msra.mxu0 0.0
  %212 = vmatprep.subr.mxu0 0.0
  %213 = vmatpush1.msra.mxu0 0.0
  %214 = vmatprep.subr.mxu0 0.0
  %215 = vmatpush1.msra.mxu0 0.0
  %216 = vmatprep.subr.mxu0 0.0
  %217 = vmatpush1.msra.mxu0 0.0
  %218 = vmatprep.subr.mxu0 0.0
  %219 = vmatpush1.msra.mxu0 0.0
  %220 = vmatprep.subr.mxu0 0.0
  %221 = vmatpush1.msra.mxu0 0.0
  %222 = vmatprep.subr.mxu0 0.0
  %223 = vmatpush1.msra.mxu0 0.0
  %224 = vmatprep.subr.mxu0 0.0
  %225 = vmatpush1.msra.mxu0 0.0
  %226 = vmatprep.subr.mxu0 0.0
  %227 = vmatpush1.msra.mxu0 0.0
  %228 = vmatprep.subr.mxu0 0.0
  %229 = vmatpush1.msra.mxu0 0.0
  %230 = vmatprep.subr.mxu0 0.0
  %231 = vmatpush1.msra.mxu0 0.0
  %232 = vmatprep.subr.mxu0 0.0
  %233 = vmatpush1.msra.mxu0 0.0
  %234 = vmatprep.subr.mxu0 0.0
  %235 = vmatpush1.msra.mxu0 0.0
  %236 = vmatprep.subr.mxu0 0.0
  %237 = vmatpush1.msra.mxu0 0.0
  %238 = vmatprep.subr.mxu0 0.0
  %239 = vmatpush1.msra.mxu0 0.0
  %240 = vmatprep.subr.mxu0 0.0
  %241 = vmatpush1.msra.mxu0 0.0
  %242 = vmatprep.subr.mxu0 0.0
  %243 = vmatpush1.msra.mxu0 0.0
  %244 = vmatprep.subr.mxu0 0.0
  %245 = vmatpush1.msra.mxu0 0.0
  %246 = vmatprep.subr.mxu0 0.0
  %247 = vmatpush1.msra.mxu0 0.0
  %248 = vmatprep.subr.mxu0 0.0
  %249 = vmatpush1.msra.mxu0 0.0
  %250 = vmatprep.subr.mxu0 0.0
  %251 = vmatpush1.msra.mxu0 0.0
  %252 = vmatprep.subr.mxu0 0.0
  %253 = vmatpush1.msra.mxu0 0.0
  %254 = vmatprep.subr.mxu0 0.0
  %255 = vmatpush1.msra.mxu0 0.0
  %256 = vmatprep.subr.mxu0 0.0
  %257 = vmatpush1.msra.mxu0 0.0
  %258 = vmatprep.subr.mxu0 0.0
  %259 = vmatpush1.msra.mxu0 0.0
  %260 = vmatprep.subr.mxu0 0.0
  %261 = vmatpush1.msra.mxu0 0.0
  %262 = vmatprep.subr.mxu0 0.0
  %263 = vmatpush1.msra.mxu0 0.0
  %264 = vmatprep.mubr.f32.mxu0 0.0
  %265 = vmatmul.mubr.f32.gmra.mrb[0].mxu0 %v195
  %v266 = vpop.f32.mrb[0].mxu0
  %v267 = vadd.f32 0.0, %v266
  %v268 = vpop.f32.mrb[0].mxu0
  %269 = vmatprep.mubr.f32.mxu0 0.0
  %270 = vmatmul.mubr.f32.gmra.mrb[0].mxu0 %v198
  %v271 = vpop.f32.mrb[0].mxu0
  %v272 = vadd.f32 0.0, %v271
  %v273 = vpop.f32.mrb[0].mxu0
  %274 = vdwg.mxu0
  %v275 = vld [vmem:[%s6] sm:$0xff]
  %v276 = vld [vmem:[%s6 + $0x8] sm:$0xff]
  %v277 = vld [vmem:[%s7] sm:$0x1]
  %279 = vset.pattern.permute.xlu0 0
  %280 = vperm.xlu0 %279, %v275
  %v281 = vpop.permute.xlu0 %280
  %284 = vset.pattern.permute.xlu0 0
  %285 = vperm.xlu0 %284, %v276
  %v286 = vpop.permute.xlu0 %285
  %v289 = vlaneseq
  %v290 = vshrl.u32 %v289, 7
  %v291 = vsub.s32 0, %v290
  %v292 = vrot.slane %v277, %v291
  %v294 = vadd.f32 %v281, %v292
  %v295 = vadd.f32 %v286, %v292
  %v296 = vmul.f32 %v267, 2.0
  %v297 = vmul.f32 %v272, 2.0
  %v298 = vsub.f32 %v294, %v296
  %v299 = vsub.f32 %v295, %v297
  %300 = vst.msk [vmem:[%s9] sm:$0xff] %vm73, %v298
  %301 = vst.msk [vmem:[%s9 + $0x8] sm:$0xff] %vm73, %v299
  // Predicated region
  $region34: #{gat_hgcn_forward.8} parent=0 // pred_check
    _
  $region35: #{gat_hgcn_forward.8} parent=0 // pred_check_branch
    %303 = sbr.rel (0) target = $region37
  $region36: #{gat_hgcn_forward.8} parent=0 // pred_region
    _
  $region37: #{gat_hgcn_forward.8} parent=0 // pred_fallthru
    _
  // Predicated region
  $region38: #{gat_hgcn_forward.8} parent=0 // pred_check
    _
  $region39: #{gat_hgcn_forward.8} parent=0 // pred_check_branch
    %305 = sbr.rel (0) target = $region41
  $region40: #{gat_hgcn_forward.8} parent=0 // pred_region
    _
  $region41: #{gat_hgcn_forward.8} parent=0 // pred_fallthru
    _
  // Predicated region
  $region42: #{gat_hgcn_forward.8} parent=0 // pred_check
    _
  $region43: #{gat_hgcn_forward.8} parent=0 // pred_check_branch
    %307 = sbr.rel (0) target = $region45
  $region44: #{gat_hgcn_forward.8} parent=0 // pred_region
    _
  $region45: #{gat_hgcn_forward.8} parent=0 // pred_fallthru
    _
  // Predicated region
  $region46: #{gat_hgcn_forward.8} parent=0 // pred_check
    _
  $region47: #{gat_hgcn_forward.8} parent=0 // pred_check_branch
    %309 = sbr.rel (0) target = $region49
  $region48: #{gat_hgcn_forward.8} parent=0 // pred_region
    _
  $region49: #{gat_hgcn_forward.8} parent=0 // pred_fallthru
    _

// kernel: gat_hgcn_forward.10
$region0: #{gat_hgcn_forward.10}
  #allocation0 [shape = 'u32[]', space=smem, size = 0x4, offset = 0x4, fixed_abs, tag = 'smem constant byte address 0x4 - core index']
  #allocation1 [shape = 'u32[144,128]{1,0:T(1,128)}', space=vmem, size = 0x12000, scoped, tag = 'internal scratch']
  %s0 = inlined_call_operand.vmem [shape: f32[16,32], index: 0, kind: input, shape index: {}]
  %s1 = inlined_call_operand.vmem [shape: f32[32,16], index: 1, kind: input, shape index: {}]
  %s2 = inlined_call_operand.vmem [shape: f32[1,16], index: 2, kind: input, shape index: {}]
  %s3 = inlined_call_operand.vmem [shape: f32[16,2], index: 3, kind: input, shape index: {}]
  %s4 = inlined_call_operand.vmem [shape: f32[16,16], index: 4, kind: output, shape index: {0}]
  %s5 = inlined_call_operand.vmem [shape: f32[16,2], index: 5, kind: output, shape index: {1}]
  %s6 = inlined_call_operand.vmem [shape: f32[16,1], index: 6, kind: output, shape index: {2}]
  %7 = xla_tuple %s4, %s5, %s6
  %s8 = sld [smem:[#allocation0]]
  $region42: #{gat_hgcn_forward.10} parent=0
    _
  %s10 = ssub.s32 1, %s8
  %s11 = scalar_select 0, %s10, %s8
  // Predicated region
  $region2: #{gat_hgcn_forward.10} parent=0 // pred_check
    _
  $region3: #{gat_hgcn_forward.10} parent=0 // pred_check_branch
    %13 = sbr.rel (0) target = $region5
  $region4: #{gat_hgcn_forward.10} parent=0 // pred_region
    _
  $region5: #{gat_hgcn_forward.10} parent=0 // pred_fallthru
    _
  // Predicated region
  $region6: #{gat_hgcn_forward.10} parent=0 // pred_check
    _
  $region7: #{gat_hgcn_forward.10} parent=0 // pred_check_branch
    %15 = sbr.rel (0) target = $region9
  $region8: #{gat_hgcn_forward.10} parent=0 // pred_region
    _
  $region9: #{gat_hgcn_forward.10} parent=0 // pred_fallthru
    _
  // Predicated region
  $region10: #{gat_hgcn_forward.10} parent=0 // pred_check
    _
  $region11: #{gat_hgcn_forward.10} parent=0 // pred_check_branch
    %17 = sbr.rel (0) target = $region13
  $region12: #{gat_hgcn_forward.10} parent=0 // pred_region
    _
  $region13: #{gat_hgcn_forward.10} parent=0 // pred_fallthru
    _
  // Predicated region
  $region14: #{gat_hgcn_forward.10} parent=0 // pred_check
    _
  $region15: #{gat_hgcn_forward.10} parent=0 // pred_check_branch
    %19 = sbr.rel (0) target = $region17
  $region16: #{gat_hgcn_forward.10} parent=0 // pred_region
    _
  $region17: #{gat_hgcn_forward.10} parent=0 // pred_fallthru
    _
  %v20 = vld [vmem:[%s0] sm:$0xff]
  %v21 = vld [vmem:[%s0 + $0x8] sm:$0xff]
  %v22 = vld [vmem:[%s1] sm:$0xff]
  %v23 = vld [vmem:[%s1 + $0x8] sm:$0xff]
  %v24 = vld [vmem:[%s1 + $0x10] sm:$0xff]
  %v25 = vld [vmem:[%s1 + $0x18] sm:$0xff]
  %v26 = vld [vmem:[%s2] sm:$0x1]
  %v28 = vlaneseq
  %v29 = vshrl.u32 %v28, 7
  %v30 = vsub.s32 0, %v29
  %v31 = vrot.slane %v26, %v30
  %vm33 = vcmask 261120
  %v35 = vsel %vm33, %v20, 0
  %v38 = vsel %vm33, %v21, 0
  %40 = vmatprep.subr.mxu0 0.0
  %41 = vmatpush1.msra.mxu0 %v22
  %42 = vmatprep.subr.mxu0 0.0
  %43 = vmatpush1.msra.mxu0 %v23
  %44 = vmatprep.subr.mxu0 0.0
  %45 = vmatpush1.msra.mxu0 %v24
  %46 = vmatprep.subr.mxu0 0.0
  %47 = vmatpush1.msra.mxu0 %v25
  %48 = vmatprep.subr.mxu0 0.0
  %49 = vmatpush1.msra.mxu0 0.0
  %50 = vmatprep.subr.mxu0 0.0
  %51 = vmatpush1.msra.mxu0 0.0
  %52 = vmatprep.subr.mxu0 0.0
  %53 = vmatpush1.msra.mxu0 0.0
  %54 = vmatprep.subr.mxu0 0.0
  %55 = vmatpush1.msra.mxu0 0.0
  %56 = vmatprep.subr.mxu0 0.0
  %57 = vmatpush1.msra.mxu0 0.0
  %58 = vmatprep.subr.mxu0 0.0
  %59 = vmatpush1.msra.mxu0 0.0
  %60 = vmatprep.subr.mxu0 0.0
  %61 = vmatpush1.msra.mxu0 0.0
  %62 = vmatprep.subr.mxu0 0.0
  %63 = vmatpush1.msra.mxu0 0.0
  %64 = vmatprep.subr.mxu0 0.0
  %65 = vmatpush1.msra.mxu0 0.0
  %66 = vmatprep.subr.mxu0 0.0
  %67 = vmatpush1.msra.mxu0 0.0
  %68 = vmatprep.subr.mxu0 0.0
  %69 = vmatpush1.msra.mxu0 0.0
  %70 = vmatprep.subr.mxu0 0.0
  %71 = vmatpush1.msra.mxu0 0.0
  %72 = vmatprep.subr.mxu0 0.0
  %73 = vmatpush1.msra.mxu0 0.0
  %74 = vmatprep.subr.mxu0 0.0
  %75 = vmatpush1.msra.mxu0 0.0
  %76 = vmatprep.subr.mxu0 0.0
  %77 = vmatpush1.msra.mxu0 0.0
  %78 = vmatprep.subr.mxu0 0.0
  %79 = vmatpush1.msra.mxu0 0.0
  %80 = vmatprep.subr.mxu0 0.0
  %81 = vmatpush1.msra.mxu0 0.0
  %82 = vmatprep.subr.mxu0 0.0
  %83 = vmatpush1.msra.mxu0 0.0
  %84 = vmatprep.subr.mxu0 0.0
  %85 = vmatpush1.msra.mxu0 0.0
  %86 = vmatprep.subr.mxu0 0.0
  %87 = vmatpush1.msra.mxu0 0.0
  %88 = vmatprep.subr.mxu0 0.0
  %89 = vmatpush1.msra.mxu0 0.0
  %90 = vmatprep.subr.mxu0 0.0
  %91 = vmatpush1.msra.mxu0 0.0
  %92 = vmatprep.subr.mxu0 0.0
  %93 = vmatpush1.msra.mxu0 0.0
  %94 = vmatprep.subr.mxu0 0.0
  %95 = vmatpush1.msra.mxu0 0.0
  %96 = vmatprep.subr.mxu0 0.0
  %97 = vmatpush1.msra.mxu0 0.0
  %98 = vmatprep.subr.mxu0 0.0
  %99 = vmatpush1.msra.mxu0 0.0
  %100 = vmatprep.subr.mxu0 0.0
  %101 = vmatpush1.msra.mxu0 0.0
  %102 = vmatprep.subr.mxu0 0.0
  %103 = vmatpush1.msra.mxu0 0.0
  %104 = vmatprep.mubr.f32.mxu0 0.0
  %105 = vmatmul.mubr.f32.gmra.mrb[0].mxu0 %v35
  %v106 = vpop.f32.mrb[0].mxu0
  %v107 = vadd.f32 %v31, %v106
  %v108 = vpop.f32.mrb[0].mxu0
  %109 = vmatprep.mubr.f32.mxu0 0.0
  %110 = vmatmul.mubr.f32.gmra.mrb[0].mxu0 %v38
  %v111 = vpop.f32.mrb[0].mxu0
  %v112 = vadd.f32 %v31, %v111
  %v113 = vpop.f32.mrb[0].mxu0
  %114 = vdwg.mxu0
  %vm115 = vcmask 130048
  %116 = vst.msk [vmem:[%s4] sm:$0xff] %vm115, %v107
  %117 = vst.msk [vmem:[%s4 + $0x8] sm:$0xff] %vm115, %v112
  %v118 = vld [vmem:[%s3] sm:$0xff]
  %v119 = vld [vmem:[%s3 + $0x8] sm:$0xff]
  %v121 = vsel %vm115, %v107, 0
  %v124 = vsel %vm115, %v112, 0
  %126 = vmatprep.subr.mxu0 0.0
  %127 = vmatpush1.msra.mxu0 %v118
  %128 = vmatprep.subr.mxu0 0.0
  %129 = vmatpush1.msra.mxu0 %v119
  %130 = vmatprep.subr.mxu0 0.0
  %131 = vmatpush1.msra.mxu0 0.0
  %132 = vmatprep.subr.mxu0 0.0
  %133 = vmatpush1.msra.mxu0 0.0
  %134 = vmatprep.subr.mxu0 0.0
  %135 = vmatpush1.msra.mxu0 0.0
  %136 = vmatprep.subr.mxu0 0.0
  %137 = vmatpush1.msra.mxu0 0.0
  %138 = vmatprep.subr.mxu0 0.0
  %139 = vmatpush1.msra.mxu0 0.0
  %140 = vmatprep.subr.mxu0 0.0
  %141 = vmatpush1.msra.mxu0 0.0
  %142 = vmatprep.subr.mxu0 0.0
  %143 = vmatpush1.msra.mxu0 0.0
  %144 = vmatprep.subr.mxu0 0.0
  %145 = vmatpush1.msra.mxu0 0.0
  %146 = vmatprep.subr.mxu0 0.0
  %147 = vmatpush1.msra.mxu0 0.0
  %148 = vmatprep.subr.mxu0 0.0
  %149 = vmatpush1.msra.mxu0 0.0
  %150 = vmatprep.subr.mxu0 0.0
  %151 = vmatpush1.msra.mxu0 0.0
  %152 = vmatprep.subr.mxu0 0.0
  %153 = vmatpush1.msra.mxu0 0.0
  %154 = vmatprep.subr.mxu0 0.0
  %155 = vmatpush1.msra.mxu0 0.0
  %156 = vmatprep.subr.mxu0 0.0
  %157 = vmatpush1.msra.mxu0 0.0
  %158 = vmatprep.subr.mxu0 0.0
  %159 = vmatpush1.msra.mxu0 0.0
  %160 = vmatprep.subr.mxu0 0.0
  %161 = vmatpush1.msra.mxu0 0.0
  %162 = vmatprep.subr.mxu0 0.0
  %163 = vmatpush1.msra.mxu0 0.0
  %164 = vmatprep.subr.mxu0 0.0
  %165 = vmatpush1.msra.mxu0 0.0
  %166 = vmatprep.subr.mxu0 0.0
  %167 = vmatpush1.msra.mxu0 0.0
  %168 = vmatprep.subr.mxu0 0.0
  %169 = vmatpush1.msra.mxu0 0.0
  %170 = vmatprep.subr.mxu0 0.0
  %171 = vmatpush1.msra.mxu0 0.0
  %172 = vmatprep.subr.mxu0 0.0
  %173 = vmatpush1.msra.mxu0 0.0
  %174 = vmatprep.subr.mxu0 0.0
  %175 = vmatpush1.msra.mxu0 0.0
  %176 = vmatprep.subr.mxu0 0.0
  %177 = vmatpush1.msra.mxu0 0.0
  %178 = vmatprep.subr.mxu0 0.0
  %179 = vmatpush1.msra.mxu0 0.0
  %180 = vmatprep.subr.mxu0 0.0
  %181 = vmatpush1.msra.mxu0 0.0
  %182 = vmatprep.subr.mxu0 0.0
  %183 = vmatpush1.msra.mxu0 0.0
  %184 = vmatprep.subr.mxu0 0.0
  %185 = vmatpush1.msra.mxu0 0.0
  %186 = vmatprep.subr.mxu0 0.0
  %187 = vmatpush1.msra.mxu0 0.0
  %188 = vmatprep.subr.mxu0 0.0
  %189 = vmatpush1.msra.mxu0 0.0
  %190 = vmatprep.mubr.f32.mxu0 0.0
  %191 = vmatmul.mubr.f32.gmra.mrb[0].mxu0 %v121
  %v192 = vpop.f32.mrb[0].mxu0
  %v193 = vadd.f32 0.0, %v192
  %v194 = vpop.f32.mrb[0].mxu0
  %195 = vmatprep.mubr.f32.mxu0 0.0
  %196 = vmatmul.mubr.f32.gmra.mrb[0].mxu0 %v124
  %v197 = vpop.f32.mrb[0].mxu0
  %v198 = vadd.f32 0.0, %v197
  %v199 = vpop.f32.mrb[0].mxu0
  %200 = vdwg.mxu0
  %vm201 = vcmask 15360
  %202 = vst.msk [vmem:[%s5] sm:$0xff] %vm201, %v193
  %203 = vst.msk [vmem:[%s5 + $0x8] sm:$0xff] %vm201, %v198
  %v204 = vmul.f32 %v107, %v107
  %v205 = vmul.f32 %v112, %v112
  %v206 = vsel %vm115, %v204, 0.0
  %207 = vadd.xlane.f32.xlu0 %v206
  %v208 = vpop.xlane.xlu0 %207
  %v209 = vsel %vm115, %v205, 0.0
  %210 = vadd.xlane.f32.xlu0 %v209
  %v211 = vpop.xlane.xlu0 %210
  %vm212 = vcmask 7168
  %213 = vst.msk [vmem:[%s6] sm:$0xff] %vm212, %v208
  %214 = vst.msk [vmem:[%s6 + $0x8] sm:$0xff] %vm212, %v211
  // Predicated region
  $region18: #{gat_hgcn_forward.10} parent=0 // pred_check
    _
  $region19: #{gat_hgcn_forward.10} parent=0 // pred_check_branch
    %216 = sbr.rel (0) target = $region21
  $region20: #{gat_hgcn_forward.10} parent=0 // pred_region
    _
  $region21: #{gat_hgcn_forward.10} parent=0 // pred_fallthru
    _
  // Predicated region
  $region22: #{gat_hgcn_forward.10} parent=0 // pred_check
    _
  $region23: #{gat_hgcn_forward.10} parent=0 // pred_check_branch
    %218 = sbr.rel (0) target = $region25
  $region24: #{gat_hgcn_forward.10} parent=0 // pred_region
    _
  $region25: #{gat_hgcn_forward.10} parent=0 // pred_fallthru
    _
  // Predicated region
  $region26: #{gat_hgcn_forward.10} parent=0 // pred_check
    _
  $region27: #{gat_hgcn_forward.10} parent=0 // pred_check_branch
    %220 = sbr.rel (0) target = $region29
  $region28: #{gat_hgcn_forward.10} parent=0 // pred_region
    _
  $region29: #{gat_hgcn_forward.10} parent=0 // pred_fallthru
    _
  // Predicated region
  $region30: #{gat_hgcn_forward.10} parent=0 // pred_check
    _
  $region31: #{gat_hgcn_forward.10} parent=0 // pred_check_branch
    %222 = sbr.rel (0) target = $region33
  $region32: #{gat_hgcn_forward.10} parent=0 // pred_region
    _
  $region33: #{gat_hgcn_forward.10} parent=0 // pred_fallthru
    _
  // Predicated region
  $region34: #{gat_hgcn_forward.10} parent=0 // pred_check
    _
  $region35: #{gat_hgcn_forward.10} parent=0 // pred_check_branch
    %224 = sbr.rel (0) target = $region37
  $region36: #{gat_hgcn_forward.10} parent=0 // pred_region
    _
  $region37: #{gat_hgcn_forward.10} parent=0 // pred_fallthru
    _
  // Predicated region
  $region38: #{gat_hgcn_forward.10} parent=0 // pred_check
    _
  $region39: #{gat_hgcn_forward.10} parent=0 // pred_check_branch
    %226 = sbr.rel (0) target = $region41
  $region40: #{gat_hgcn_forward.10} parent=0 // pred_region
    _
  $region41: #{gat_hgcn_forward.10} parent=0 // pred_fallthru
    _

// kernel: gat_hgcn_forward.9
$region0: #{gat_hgcn_forward.9}
  #allocation0 [shape = 'u32[]', space=smem, size = 0x4, offset = 0x4, fixed_abs, tag = 'smem constant byte address 0x4 - core index']
  #allocation1 [shape = 'u32[144,128]{1,0:T(1,128)}', space=vmem, size = 0x12000, scoped, tag = 'internal scratch']
  %s0 = inlined_call_operand.vmem [shape: f32[16,16], index: 0, kind: input, shape index: {}]
  %s1 = inlined_call_operand.vmem [shape: f32[16,32], index: 1, kind: input, shape index: {}]
  %s2 = inlined_call_operand.vmem [shape: f32[16,32], index: 2, kind: output, shape index: {}]
  %s3 = sld [smem:[#allocation0]]
  $region18: #{gat_hgcn_forward.9} parent=0
    _
  %s5 = ssub.s32 1, %s3
  %s6 = scalar_select 0, %s5, %s3
  // Predicated region
  $region2: #{gat_hgcn_forward.9} parent=0 // pred_check
    _
  $region3: #{gat_hgcn_forward.9} parent=0 // pred_check_branch
    %8 = sbr.rel (0) target = $region5
  $region4: #{gat_hgcn_forward.9} parent=0 // pred_region
    _
  $region5: #{gat_hgcn_forward.9} parent=0 // pred_fallthru
    _
  // Predicated region
  $region6: #{gat_hgcn_forward.9} parent=0 // pred_check
    _
  $region7: #{gat_hgcn_forward.9} parent=0 // pred_check_branch
    %10 = sbr.rel (0) target = $region9
  $region8: #{gat_hgcn_forward.9} parent=0 // pred_region
    _
  $region9: #{gat_hgcn_forward.9} parent=0 // pred_fallthru
    _
  %v11 = vld [vmem:[%s0] sm:$0xff]
  %v12 = vld [vmem:[%s0 + $0x8] sm:$0xff]
  %v13 = vld [vmem:[%s1] sm:$0xff]
  %v14 = vld [vmem:[%s1 + $0x8] sm:$0xff]
  %vm15 = vcmask 130048
  %v17 = vsel %vm15, %v11, 0
  %v20 = vsel %vm15, %v12, 0
  %22 = vmatprep.subr.mxu0 0.0
  %23 = vmatpush1.msra.mxu0 %v13
  %24 = vmatprep.subr.mxu0 0.0
  %25 = vmatpush1.msra.mxu0 %v14
  %26 = vmatprep.subr.mxu0 0.0
  %27 = vmatpush1.msra.mxu0 0.0
  %28 = vmatprep.subr.mxu0 0.0
  %29 = vmatpush1.msra.mxu0 0.0
  %30 = vmatprep.subr.mxu0 0.0
  %31 = vmatpush1.msra.mxu0 0.0
  %32 = vmatprep.subr.mxu0 0.0
  %33 = vmatpush1.msra.mxu0 0.0
  %34 = vmatprep.subr.mxu0 0.0
  %35 = vmatpush1.msra.mxu0 0.0
  %36 = vmatprep.subr.mxu0 0.0
  %37 = vmatpush1.msra.mxu0 0.0
  %38 = vmatprep.subr.mxu0 0.0
  %39 = vmatpush1.msra.mxu0 0.0
  %40 = vmatprep.subr.mxu0 0.0
  %41 = vmatpush1.msra.mxu0 0.0
  %42 = vmatprep.subr.mxu0 0.0
  %43 = vmatpush1.msra.mxu0 0.0
  %44 = vmatprep.subr.mxu0 0.0
  %45 = vmatpush1.msra.mxu0 0.0
  %46 = vmatprep.subr.mxu0 0.0
  %47 = vmatpush1.msra.mxu0 0.0
  %48 = vmatprep.subr.mxu0 0.0
  %49 = vmatpush1.msra.mxu0 0.0
  %50 = vmatprep.subr.mxu0 0.0
  %51 = vmatpush1.msra.mxu0 0.0
  %52 = vmatprep.subr.mxu0 0.0
  %53 = vmatpush1.msra.mxu0 0.0
  %54 = vmatprep.subr.mxu0 0.0
  %55 = vmatpush1.msra.mxu0 0.0
  %56 = vmatprep.subr.mxu0 0.0
  %57 = vmatpush1.msra.mxu0 0.0
  %58 = vmatprep.subr.mxu0 0.0
  %59 = vmatpush1.msra.mxu0 0.0
  %60 = vmatprep.subr.mxu0 0.0
  %61 = vmatpush1.msra.mxu0 0.0
  %62 = vmatprep.subr.mxu0 0.0
  %63 = vmatpush1.msra.mxu0 0.0
  %64 = vmatprep.subr.mxu0 0.0
  %65 = vmatpush1.msra.mxu0 0.0
  %66 = vmatprep.subr.mxu0 0.0
  %67 = vmatpush1.msra.mxu0 0.0
  %68 = vmatprep.subr.mxu0 0.0
  %69 = vmatpush1.msra.mxu0 0.0
  %70 = vmatprep.subr.mxu0 0.0
  %71 = vmatpush1.msra.mxu0 0.0
  %72 = vmatprep.subr.mxu0 0.0
  %73 = vmatpush1.msra.mxu0 0.0
  %74 = vmatprep.subr.mxu0 0.0
  %75 = vmatpush1.msra.mxu0 0.0
  %76 = vmatprep.subr.mxu0 0.0
  %77 = vmatpush1.msra.mxu0 0.0
  %78 = vmatprep.subr.mxu0 0.0
  %79 = vmatpush1.msra.mxu0 0.0
  %80 = vmatprep.subr.mxu0 0.0
  %81 = vmatpush1.msra.mxu0 0.0
  %82 = vmatprep.subr.mxu0 0.0
  %83 = vmatpush1.msra.mxu0 0.0
  %84 = vmatprep.subr.mxu0 0.0
  %85 = vmatpush1.msra.mxu0 0.0
  %86 = vmatprep.mubr.f32.mxu0 0.0
  %87 = vmatmul.mubr.f32.gmra.mrb[0].mxu0 %v17
  %v88 = vpop.f32.mrb[0].mxu0
  %v89 = vadd.f32 0.0, %v88
  %v90 = vpop.f32.mrb[0].mxu0
  %91 = vmatprep.mubr.f32.mxu0 0.0
  %92 = vmatmul.mubr.f32.gmra.mrb[0].mxu0 %v20
  %v93 = vpop.f32.mrb[0].mxu0
  %v94 = vadd.f32 0.0, %v93
  %v95 = vpop.f32.mrb[0].mxu0
  %96 = vdwg.mxu0
  %vm97 = vcmp.gt.f32.partialorder %v89, 0.0
  %vm98 = vcmp.gt.f32.partialorder %v94, 0.0
  %v99 = vmin.f32 %v89, 0.0
  %v100 = vmin.f32 %v94, 0.0
  %v101 = vmul.f32 %v99, 1.442695
  %v102 = vpow.pop %v101
  %v103 = vmul.f32 %v100, 1.442695
  %v104 = vpow.pop %v103
  %v105 = vsub.f32 %v102, 1.0
  %v106 = vsub.f32 %v104, 1.0
  %v107 = vsel %vm97, %v89, %v105
  %v108 = vsel %vm98, %v94, %v106
  %v109 = vmax.f32 %v107, 0.0
  %v110 = vmax.f32 %v108, 0.0
  %vm111 = vcmask 261120
  %112 = vst.msk [vmem:[%s2] sm:$0xff] %vm111, %v109
  %113 = vst.msk [vmem:[%s2 + $0x8] sm:$0xff] %vm111, %v110
  // Predicated region
  $region10: #{gat_hgcn_forward.9} parent=0 // pred_check
    _
  $region11: #{gat_hgcn_forward.9} parent=0 // pred_check_branch
    %115 = sbr.rel (0) target = $region13
  $region12: #{gat_hgcn_forward.9} parent=0 // pred_region
    _
  $region13: #{gat_hgcn_forward.9} parent=0 // pred_fallthru
    _
  // Predicated region
  $region14: #{gat_hgcn_forward.9} parent=0 // pred_check
    _
  $region15: #{gat_hgcn_forward.9} parent=0 // pred_check_branch
    %117 = sbr.rel (0) target = $region17
  $region16: #{gat_hgcn_forward.9} parent=0 // pred_region
    _
  $region17: #{gat_hgcn_forward.9} parent=0 // pred_fallthru
    _

// kernel: gat_hgcn_forward.12
$region0: #{gat_hgcn_forward.12}
  #allocation0 [shape = 'u32[]', space=smem, size = 0x4, offset = 0x4, fixed_abs, tag = 'smem constant byte address 0x4 - core index']
  #allocation1 [shape = 'u32[144,128]{1,0:T(1,128)}', space=vmem, size = 0x12000, scoped, tag = 'internal scratch']
  %s0 = inlined_call_operand.vmem [shape: f32[16,16], index: 0, kind: input, shape index: {}]
  %s1 = inlined_call_operand.vmem [shape: f32[16,16], index: 1, kind: input, shape index: {}]
  %s2 = inlined_call_operand.vmem [shape: f32[16,16], index: 2, kind: output, shape index: {}]
  %s3 = sld [smem:[#allocation0]]
  $region18: #{gat_hgcn_forward.12} parent=0
    _
  %s5 = ssub.s32 1, %s3
  %s6 = scalar_select 0, %s5, %s3
  // Predicated region
  $region2: #{gat_hgcn_forward.12} parent=0 // pred_check
    _
  $region3: #{gat_hgcn_forward.12} parent=0 // pred_check_branch
    %8 = sbr.rel (0) target = $region5
  $region4: #{gat_hgcn_forward.12} parent=0 // pred_region
    _
  $region5: #{gat_hgcn_forward.12} parent=0 // pred_fallthru
    _
  // Predicated region
  $region6: #{gat_hgcn_forward.12} parent=0 // pred_check
    _
  $region7: #{gat_hgcn_forward.12} parent=0 // pred_check_branch
    %10 = sbr.rel (0) target = $region9
  $region8: #{gat_hgcn_forward.12} parent=0 // pred_region
    _
  $region9: #{gat_hgcn_forward.12} parent=0 // pred_fallthru
    _
  %v11 = vld [vmem:[%s0] sm:$0xff]
  %v12 = vld [vmem:[%s0 + $0x8] sm:$0xff]
  %v13 = vld [vmem:[%s1] sm:$0xff]
  %v14 = vld [vmem:[%s1 + $0x8] sm:$0xff]
  %vm15 = vcmask 130048
  %v17 = vsel %vm15, %v11, 0
  %v20 = vsel %vm15, %v12, 0
  %22 = vmatprep.subr.mxu0 0.0
  %23 = vmatpush1.msra.mxu0 %v13
  %24 = vmatprep.subr.mxu0 0.0
  %25 = vmatpush1.msra.mxu0 %v14
  %26 = vmatprep.subr.mxu0 0.0
  %27 = vmatpush1.msra.mxu0 0.0
  %28 = vmatprep.subr.mxu0 0.0
  %29 = vmatpush1.msra.mxu0 0.0
  %30 = vmatprep.subr.mxu0 0.0
  %31 = vmatpush1.msra.mxu0 0.0
  %32 = vmatprep.subr.mxu0 0.0
  %33 = vmatpush1.msra.mxu0 0.0
  %34 = vmatprep.subr.mxu0 0.0
  %35 = vmatpush1.msra.mxu0 0.0
  %36 = vmatprep.subr.mxu0 0.0
  %37 = vmatpush1.msra.mxu0 0.0
  %38 = vmatprep.subr.mxu0 0.0
  %39 = vmatpush1.msra.mxu0 0.0
  %40 = vmatprep.subr.mxu0 0.0
  %41 = vmatpush1.msra.mxu0 0.0
  %42 = vmatprep.subr.mxu0 0.0
  %43 = vmatpush1.msra.mxu0 0.0
  %44 = vmatprep.subr.mxu0 0.0
  %45 = vmatpush1.msra.mxu0 0.0
  %46 = vmatprep.subr.mxu0 0.0
  %47 = vmatpush1.msra.mxu0 0.0
  %48 = vmatprep.subr.mxu0 0.0
  %49 = vmatpush1.msra.mxu0 0.0
  %50 = vmatprep.subr.mxu0 0.0
  %51 = vmatpush1.msra.mxu0 0.0
  %52 = vmatprep.subr.mxu0 0.0
  %53 = vmatpush1.msra.mxu0 0.0
  %54 = vmatprep.subr.mxu0 0.0
  %55 = vmatpush1.msra.mxu0 0.0
  %56 = vmatprep.subr.mxu0 0.0
  %57 = vmatpush1.msra.mxu0 0.0
  %58 = vmatprep.subr.mxu0 0.0
  %59 = vmatpush1.msra.mxu0 0.0
  %60 = vmatprep.subr.mxu0 0.0
  %61 = vmatpush1.msra.mxu0 0.0
  %62 = vmatprep.subr.mxu0 0.0
  %63 = vmatpush1.msra.mxu0 0.0
  %64 = vmatprep.subr.mxu0 0.0
  %65 = vmatpush1.msra.mxu0 0.0
  %66 = vmatprep.subr.mxu0 0.0
  %67 = vmatpush1.msra.mxu0 0.0
  %68 = vmatprep.subr.mxu0 0.0
  %69 = vmatpush1.msra.mxu0 0.0
  %70 = vmatprep.subr.mxu0 0.0
  %71 = vmatpush1.msra.mxu0 0.0
  %72 = vmatprep.subr.mxu0 0.0
  %73 = vmatpush1.msra.mxu0 0.0
  %74 = vmatprep.subr.mxu0 0.0
  %75 = vmatpush1.msra.mxu0 0.0
  %76 = vmatprep.subr.mxu0 0.0
  %77 = vmatpush1.msra.mxu0 0.0
  %78 = vmatprep.subr.mxu0 0.0
  %79 = vmatpush1.msra.mxu0 0.0
  %80 = vmatprep.subr.mxu0 0.0
  %81 = vmatpush1.msra.mxu0 0.0
  %82 = vmatprep.subr.mxu0 0.0
  %83 = vmatpush1.msra.mxu0 0.0
  %84 = vmatprep.subr.mxu0 0.0
  %85 = vmatpush1.msra.mxu0 0.0
  %86 = vmatprep.mubr.f32.mxu0 0.0
  %87 = vmatmul.mubr.f32.gmra.mrb[0].mxu0 %v17
  %v88 = vpop.f32.mrb[0].mxu0
  %v89 = vadd.f32 0.0, %v88
  %v90 = vpop.f32.mrb[0].mxu0
  %91 = vmatprep.mubr.f32.mxu0 0.0
  %92 = vmatmul.mubr.f32.gmra.mrb[0].mxu0 %v20
  %v93 = vpop.f32.mrb[0].mxu0
  %v94 = vadd.f32 0.0, %v93
  %v95 = vpop.f32.mrb[0].mxu0
  %96 = vdwg.mxu0
  %vm97 = vcmp.gt.f32.partialorder %v89, 0.0
  %vm98 = vcmp.gt.f32.partialorder %v94, 0.0
  %v99 = vmin.f32 %v89, 0.0
  %v100 = vmin.f32 %v94, 0.0
  %v101 = vmul.f32 %v99, 1.442695
  %v102 = vpow.pop %v101
  %v103 = vmul.f32 %v100, 1.442695
  %v104 = vpow.pop %v103
  %v105 = vsub.f32 %v102, 1.0
  %v106 = vsub.f32 %v104, 1.0
  %v107 = vsel %vm97, %v89, %v105
  %v108 = vsel %vm98, %v94, %v106
  %109 = vst.msk [vmem:[%s2] sm:$0xff] %vm15, %v107
  %110 = vst.msk [vmem:[%s2 + $0x8] sm:$0xff] %vm15, %v108
  // Predicated region
  $region10: #{gat_hgcn_forward.12} parent=0 // pred_check
    _
  $region11: #{gat_hgcn_forward.12} parent=0 // pred_check_branch
    %112 = sbr.rel (0) target = $region13
  $region12: #{gat_hgcn_forward.12} parent=0 // pred_region
    _
  $region13: #{gat_hgcn_forward.12} parent=0 // pred_fallthru
    _
  // Predicated region
  $region14: #{gat_hgcn_forward.12} parent=0 // pred_check
    _
  $region15: #{gat_hgcn_forward.12} parent=0 // pred_check_branch
    %114 = sbr.rel (0) target = $region17
  $region16: #{gat_hgcn_forward.12} parent=0 // pred_region
    _
  $region17: #{gat_hgcn_forward.12} parent=0 // pred_fallthru
    _

// kernel: gat_hgcn_forward.11
$region0: #{gat_hgcn_forward.11}
  #allocation0 [shape = 'u32[]', space=smem, size = 0x4, offset = 0x4, fixed_abs, tag = 'smem constant byte address 0x4 - core index']
  #allocation1 [shape = 'u32[144,128]{1,0:T(1,128)}', space=vmem, size = 0x12000, scoped, tag = 'internal scratch']
  %s0 = inlined_call_operand.vmem [shape: bf16[16,16], index: 0, kind: input, shape index: {}]
  %s1 = inlined_call_operand.vmem [shape: f32[16,1], index: 1, kind: input, shape index: {}]
  %s2 = inlined_call_operand.vmem [shape: f32[1,16], index: 2, kind: input, shape index: {}]
  %s3 = inlined_call_operand.vmem [shape: f32[16,16], index: 3, kind: input, shape index: {}, may-alias: {3,4}]
  %s4 = inlined_call_operand.vmem [shape: f32[16,16], index: 4, kind: input, shape index: {}, may-alias: {3,4}]
  %s5 = inlined_call_operand.vmem [shape: f32[16,16], index: 5, kind: input, shape index: {}]
  %s6 = inlined_call_operand.vmem [shape: f32[16,1], index: 6, kind: input, shape index: {}]
  %s7 = inlined_call_operand.vmem [shape: f32[1,16], index: 7, kind: input, shape index: {}]
  %s8 = inlined_call_operand.vmem [shape: f32[16,16], index: 8, kind: output, shape index: {0}]
  %s9 = inlined_call_operand.vmem [shape: f32[16,16], index: 9, kind: output, shape index: {1}]
  %10 = xla_tuple %s8, %s9
  %s11 = sld [smem:[#allocation0]]
  $region50: #{gat_hgcn_forward.11} parent=0
    _
  %s13 = ssub.s32 1, %s11
  %s14 = scalar_select 0, %s13, %s11
  // Predicated region
  $region2: #{gat_hgcn_forward.11} parent=0 // pred_check
    _
  $region3: #{gat_hgcn_forward.11} parent=0 // pred_check_branch
    %16 = sbr.rel (0) target = $region5
  $region4: #{gat_hgcn_forward.11} parent=0 // pred_region
    _
  $region5: #{gat_hgcn_forward.11} parent=0 // pred_fallthru
    _
  // Predicated region
  $region6: #{gat_hgcn_forward.11} parent=0 // pred_check
    _
  $region7: #{gat_hgcn_forward.11} parent=0 // pred_check_branch
    %18 = sbr.rel (0) target = $region9
  $region8: #{gat_hgcn_forward.11} parent=0 // pred_region
    _
  $region9: #{gat_hgcn_forward.11} parent=0 // pred_fallthru
    _
  // Predicated region
  $region10: #{gat_hgcn_forward.11} parent=0 // pred_check
    _
  $region11: #{gat_hgcn_forward.11} parent=0 // pred_check_branch
    %20 = sbr.rel (0) target = $region13
  $region12: #{gat_hgcn_forward.11} parent=0 // pred_region
    _
  $region13: #{gat_hgcn_forward.11} parent=0 // pred_fallthru
    _
  // Predicated region
  $region14: #{gat_hgcn_forward.11} parent=0 // pred_check
    _
  $region15: #{gat_hgcn_forward.11} parent=0 // pred_check_branch
    %22 = sbr.rel (0) target = $region17
  $region16: #{gat_hgcn_forward.11} parent=0 // pred_region
    _
  $region17: #{gat_hgcn_forward.11} parent=0 // pred_fallthru
    _
  // Predicated region
  $region18: #{gat_hgcn_forward.11} parent=0 // pred_check
    _
  $region19: #{gat_hgcn_forward.11} parent=0 // pred_check_branch
    %24 = sbr.rel (0) target = $region21
  $region20: #{gat_hgcn_forward.11} parent=0 // pred_region
    _
  $region21: #{gat_hgcn_forward.11} parent=0 // pred_fallthru
    _
  // Predicated region
  $region22: #{gat_hgcn_forward.11} parent=0 // pred_check
    _
  $region23: #{gat_hgcn_forward.11} parent=0 // pred_check_branch
    %26 = sbr.rel (0) target = $region25
  $region24: #{gat_hgcn_forward.11} parent=0 // pred_region
    _
  $region25: #{gat_hgcn_forward.11} parent=0 // pred_fallthru
    _
  // Predicated region
  $region26: #{gat_hgcn_forward.11} parent=0 // pred_check
    _
  $region27: #{gat_hgcn_forward.11} parent=0 // pred_check_branch
    %28 = sbr.rel (0) target = $region29
  $region28: #{gat_hgcn_forward.11} parent=0 // pred_region
    _
  $region29: #{gat_hgcn_forward.11} parent=0 // pred_fallthru
    _
  // Predicated region
  $region30: #{gat_hgcn_forward.11} parent=0 // pred_check
    _
  $region31: #{gat_hgcn_forward.11} parent=0 // pred_check_branch
    %30 = sbr.rel (0) target = $region33
  $region32: #{gat_hgcn_forward.11} parent=0 // pred_region
    _
  $region33: #{gat_hgcn_forward.11} parent=0 // pred_fallthru
    _
  %v34 = vld [vmem:[%s0] sm:$0xf]
  %v35 = vld [vmem:[%s0 + $0x4] sm:$0xf]
  %vm36 = vcmp.gt.bf16.partialorder %v34, 0
  %vm37 = vcmp.gt.bf16.partialorder %v35, 0
  %v38 = vld [vmem:[%s1] sm:$0xff]
  %v39 = vld [vmem:[%s1 + $0x8] sm:$0xff]
  %v40 = vld [vmem:[%s2] sm:$0x1]
  %42 = vset.pattern.permute.xlu0 0
  %43 = vperm.xlu0 %42, %v38
  %v44 = vpop.permute.xlu0 %43
  %47 = vset.pattern.permute.xlu0 0
  %48 = vperm.xlu0 %47, %v39
  %v49 = vpop.permute.xlu0 %48
  %v52 = vlaneseq
  %v53 = vshrl.u32 %v52, 7
  %v54 = vsub.s32 0, %v53
  %v55 = vrot.slane %v40, %v54
  %v57 = vadd.f32 %v44, %v55
  %v58 = vadd.f32 %v49, %v55
  %vm59 = vcmp.ge.f32.partialorder %v57, 0.0
  %vm60 = vcmp.ge.f32.partialorder %v58, 0.0
  %v61 = vmul.f32 %v57, 0.2
  %v62 = vmul.f32 %v58, 0.2
  %v63 = vsel %vm59, %v57, %v61
  %v64 = vsel %vm60, %v58, %v62
  %v65 = vsel %vm36, 65537, 0
  %v66 = vsel %vm37, 65537, 0
  %v67 = vunpack.c.l.b16 %v65
  %v68 = vunpack.c.l.b16 %v66
  %vm69 = vcmp.ne.s32.totalorder %v67, 0
  %vm70 = vcmp.ne.s32.totalorder %v68, 0
  %v71 = vsel %vm69, %v63, -1e+30
  %v72 = vsel %vm70, %v64, -1e+30
  %vm73 = vcmask 130048
  %v74 = vsel %vm73, %v71, -inf
  %75 = vmax.xlane.f32.xlu0 %v74
  %v76 = vpop.xlane.xlu0 %75
  %v77 = vsel %vm73, %v72, -inf
  %78 = vmax.xlane.f32.xlu0 %v77
  %v79 = vpop.xlane.xlu0 %78
  %v80 = vsub.f32 %v71, %v76
  %v81 = vsub.f32 %v72, %v79
  %v82 = vmul.f32 %v80, 1.442695
  %v83 = vpow.pop %v82
  %v84 = vmul.f32 %v81, 1.442695
  %v85 = vpow.pop %v84
  %v86 = vsel %vm69, %v83, 0.0
  %v87 = vsel %vm70, %v85, 0.0
  %v88 = vsel %vm73, %v86, 0.0
  %89 = vadd.xlane.f32.xlu0 %v88
  %v90 = vpop.xlane.xlu0 %89
  %v91 = vsel %vm73, %v87, 0.0
  %92 = vadd.xlane.f32.xlu0 %v91
  %v93 = vpop.xlane.xlu0 %92
  %v94 = vld [vmem:[%s4] sm:$0xff]
  %v95 = vld [vmem:[%s4 + $0x8] sm:$0xff]
  %v97 = vsel %vm73, %v86, 0
  %v100 = vsel %vm73, %v87, 0
  %102 = vmatprep.subr.mxu0 0.0
  %103 = vmatpush1.msra.mxu0 %v94
  %104 = vmatprep.subr.mxu0 0.0
  %105 = vmatpush1.msra.mxu0 %v95
  %106 = vmatprep.subr.mxu0 0.0
  %107 = vmatpush1.msra.mxu0 0.0
  %108 = vmatprep.subr.mxu0 0.0
  %109 = vmatpush1.msra.mxu0 0.0
  %110 = vmatprep.subr.mxu0 0.0
  %111 = vmatpush1.msra.mxu0 0.0
  %112 = vmatprep.subr.mxu0 0.0
  %113 = vmatpush1.msra.mxu0 0.0
  %114 = vmatprep.subr.mxu0 0.0
  %115 = vmatpush1.msra.mxu0 0.0
  %116 = vmatprep.subr.mxu0 0.0
  %117 = vmatpush1.msra.mxu0 0.0
  %118 = vmatprep.subr.mxu0 0.0
  %119 = vmatpush1.msra.mxu0 0.0
  %120 = vmatprep.subr.mxu0 0.0
  %121 = vmatpush1.msra.mxu0 0.0
  %122 = vmatprep.subr.mxu0 0.0
  %123 = vmatpush1.msra.mxu0 0.0
  %124 = vmatprep.subr.mxu0 0.0
  %125 = vmatpush1.msra.mxu0 0.0
  %126 = vmatprep.subr.mxu0 0.0
  %127 = vmatpush1.msra.mxu0 0.0
  %128 = vmatprep.subr.mxu0 0.0
  %129 = vmatpush1.msra.mxu0 0.0
  %130 = vmatprep.subr.mxu0 0.0
  %131 = vmatpush1.msra.mxu0 0.0
  %132 = vmatprep.subr.mxu0 0.0
  %133 = vmatpush1.msra.mxu0 0.0
  %134 = vmatprep.subr.mxu0 0.0
  %135 = vmatpush1.msra.mxu0 0.0
  %136 = vmatprep.subr.mxu0 0.0
  %137 = vmatpush1.msra.mxu0 0.0
  %138 = vmatprep.subr.mxu0 0.0
  %139 = vmatpush1.msra.mxu0 0.0
  %140 = vmatprep.subr.mxu0 0.0
  %141 = vmatpush1.msra.mxu0 0.0
  %142 = vmatprep.subr.mxu0 0.0
  %143 = vmatpush1.msra.mxu0 0.0
  %144 = vmatprep.subr.mxu0 0.0
  %145 = vmatpush1.msra.mxu0 0.0
  %146 = vmatprep.subr.mxu0 0.0
  %147 = vmatpush1.msra.mxu0 0.0
  %148 = vmatprep.subr.mxu0 0.0
  %149 = vmatpush1.msra.mxu0 0.0
  %150 = vmatprep.subr.mxu0 0.0
  %151 = vmatpush1.msra.mxu0 0.0
  %152 = vmatprep.subr.mxu0 0.0
  %153 = vmatpush1.msra.mxu0 0.0
  %154 = vmatprep.subr.mxu0 0.0
  %155 = vmatpush1.msra.mxu0 0.0
  %156 = vmatprep.subr.mxu0 0.0
  %157 = vmatpush1.msra.mxu0 0.0
  %158 = vmatprep.subr.mxu0 0.0
  %159 = vmatpush1.msra.mxu0 0.0
  %160 = vmatprep.subr.mxu0 0.0
  %161 = vmatpush1.msra.mxu0 0.0
  %162 = vmatprep.subr.mxu0 0.0
  %163 = vmatpush1.msra.mxu0 0.0
  %164 = vmatprep.subr.mxu0 0.0
  %165 = vmatpush1.msra.mxu0 0.0
  %166 = vmatprep.mubr.f32.mxu0 0.0
  %167 = vmatmul.mubr.f32.gmra.mrb[0].mxu0 %v97
  %v168 = vpop.f32.mrb[0].mxu0
  %v169 = vadd.f32 0.0, %v168
  %v170 = vpop.f32.mrb[0].mxu0
  %171 = vmatprep.mubr.f32.mxu0 0.0
  %172 = vmatmul.mubr.f32.gmra.mrb[0].mxu0 %v100
  %v173 = vpop.f32.mrb[0].mxu0
  %v174 = vadd.f32 0.0, %v173
  %v175 = vpop.f32.mrb[0].mxu0
  %176 = vdwg.mxu0
  %vm177 = vcmp.gt.f32.partialorder %v90, 0.0
  %vm178 = vcmp.gt.f32.partialorder %v93, 0.0
  %v179 = vsel %vm177, %v90, 1.0
  %v180 = vsel %vm178, %v93, 1.0
  %v181 = vrcp.pop %v179
  %v182 = vrcp.pop %v180
  %v183 = vmul.f32 %v169, %v181
  %v184 = vmul.f32 %v174, %v182
  %185 = vst.msk [vmem:[%s8] sm:$0xff] %vm73, %v183
  %186 = vst.msk [vmem:[%s8 + $0x8] sm:$0xff] %vm73, %v184
  %v187 = vld [vmem:[%s3] sm:$0xff]
  %v188 = vld [vmem:[%s3 + $0x8] sm:$0xff]
  %v189 = vld [vmem:[%s5] sm:$0xff]
  %v190 = vld [vmem:[%s5 + $0x8] sm:$0xff]
  %v192 = vsel %vm73, %v187, 0
  %v195 = vsel %vm73, %v188, 0
  %197 = vmatprep.subr.mxu0 0.0
  %198 = vmatpush1.msra.mxu0 %v189
  %199 = vmatprep.subr.mxu0 0.0
  %200 = vmatpush1.msra.mxu0 %v190
  %201 = vmatprep.subr.mxu0 0.0
  %202 = vmatpush1.msra.mxu0 0.0
  %203 = vmatprep.subr.mxu0 0.0
  %204 = vmatpush1.msra.mxu0 0.0
  %205 = vmatprep.subr.mxu0 0.0
  %206 = vmatpush1.msra.mxu0 0.0
  %207 = vmatprep.subr.mxu0 0.0
  %208 = vmatpush1.msra.mxu0 0.0
  %209 = vmatprep.subr.mxu0 0.0
  %210 = vmatpush1.msra.mxu0 0.0
  %211 = vmatprep.subr.mxu0 0.0
  %212 = vmatpush1.msra.mxu0 0.0
  %213 = vmatprep.subr.mxu0 0.0
  %214 = vmatpush1.msra.mxu0 0.0
  %215 = vmatprep.subr.mxu0 0.0
  %216 = vmatpush1.msra.mxu0 0.0
  %217 = vmatprep.subr.mxu0 0.0
  %218 = vmatpush1.msra.mxu0 0.0
  %219 = vmatprep.subr.mxu0 0.0
  %220 = vmatpush1.msra.mxu0 0.0
  %221 = vmatprep.subr.mxu0 0.0
  %222 = vmatpush1.msra.mxu0 0.0
  %223 = vmatprep.subr.mxu0 0.0
  %224 = vmatpush1.msra.mxu0 0.0
  %225 = vmatprep.subr.mxu0 0.0
  %226 = vmatpush1.msra.mxu0 0.0
  %227 = vmatprep.subr.mxu0 0.0
  %228 = vmatpush1.msra.mxu0 0.0
  %229 = vmatprep.subr.mxu0 0.0
  %230 = vmatpush1.msra.mxu0 0.0
  %231 = vmatprep.subr.mxu0 0.0
  %232 = vmatpush1.msra.mxu0 0.0
  %233 = vmatprep.subr.mxu0 0.0
  %234 = vmatpush1.msra.mxu0 0.0
  %235 = vmatprep.subr.mxu0 0.0
  %236 = vmatpush1.msra.mxu0 0.0
  %237 = vmatprep.subr.mxu0 0.0
  %238 = vmatpush1.msra.mxu0 0.0
  %239 = vmatprep.subr.mxu0 0.0
  %240 = vmatpush1.msra.mxu0 0.0
  %241 = vmatprep.subr.mxu0 0.0
  %242 = vmatpush1.msra.mxu0 0.0
  %243 = vmatprep.subr.mxu0 0.0
  %244 = vmatpush1.msra.mxu0 0.0
  %245 = vmatprep.subr.mxu0 0.0
  %246 = vmatpush1.msra.mxu0 0.0
  %247 = vmatprep.subr.mxu0 0.0
  %248 = vmatpush1.msra.mxu0 0.0
  %249 = vmatprep.subr.mxu0 0.0
  %250 = vmatpush1.msra.mxu0 0.0
  %251 = vmatprep.subr.mxu0 0.0
  %252 = vmatpush1.msra.mxu0 0.0
  %253 = vmatprep.subr.mxu0 0.0
  %254 = vmatpush1.msra.mxu0 0.0
  %255 = vmatprep.subr.mxu0 0.0
  %256 = vmatpush1.msra.mxu0 0.0
  %257 = vmatprep.subr.mxu0 0.0
  %258 = vmatpush1.msra.mxu0 0.0
  %259 = vmatprep.subr.mxu0 0.0
  %260 = vmatpush1.msra.mxu0 0.0
  %261 = vmatprep.mubr.f32.mxu0 0.0
  %262 = vmatmul.mubr.f32.gmra.mrb[0].mxu0 %v192
  %v263 = vpop.f32.mrb[0].mxu0
  %v264 = vadd.f32 0.0, %v263
  %v265 = vpop.f32.mrb[0].mxu0
  %266 = vmatprep.mubr.f32.mxu0 0.0
  %267 = vmatmul.mubr.f32.gmra.mrb[0].mxu0 %v195
  %v268 = vpop.f32.mrb[0].mxu0
  %v269 = vadd.f32 0.0, %v268
  %v270 = vpop.f32.mrb[0].mxu0
  %271 = vdwg.mxu0
  %v272 = vld [vmem:[%s6] sm:$0xff]
  %v273 = vld [vmem:[%s6 + $0x8] sm:$0xff]
  %v274 = vld [vmem:[%s7] sm:$0x1]
  %276 = vset.pattern.permute.xlu0 0
  %277 = vperm.xlu0 %276, %v272
  %v278 = vpop.permute.xlu0 %277
  %281 = vset.pattern.permute.xlu0 0
  %282 = vperm.xlu0 %281, %v273
  %v283 = vpop.permute.xlu0 %282
  %v286 = vlaneseq
  %v287 = vshrl.u32 %v286, 7
  %v288 = vsub.s32 0, %v287
  %v289 = vrot.slane %v274, %v288
  %v291 = vadd.f32 %v278, %v289
  %v292 = vadd.f32 %v283, %v289
  %v293 = vmul.f32 %v264, 2.0
  %v294 = vmul.f32 %v269, 2.0
  %v295 = vsub.f32 %v291, %v293
  %v296 = vsub.f32 %v292, %v294
  %297 = vst.msk [vmem:[%s9] sm:$0xff] %vm73, %v295
  %298 = vst.msk [vmem:[%s9 + $0x8] sm:$0xff] %vm73, %v296
  // Predicated region
  $region34: #{gat_hgcn_forward.11} parent=0 // pred_check
    _
  $region35: #{gat_hgcn_forward.11} parent=0 // pred_check_branch
    %300 = sbr.rel (0) target = $region37
  $region36: #{gat_hgcn_forward.11} parent=0 // pred_region
    _
  $region37: #{gat_hgcn_forward.11} parent=0 // pred_fallthru
    _
  // Predicated region
  $region38: #{gat_hgcn_forward.11} parent=0 // pred_check
    _
  $region39: #{gat_hgcn_forward.11} parent=0 // pred_check_branch
    %302 = sbr.rel (0) target = $region41
  $region40: #{gat_hgcn_forward.11} parent=0 // pred_region
    _
  $region41: #{gat_hgcn_forward.11} parent=0 // pred_fallthru
    _
  // Predicated region
  $region42: #{gat_hgcn_forward.11} parent=0 // pred_check
    _
  $region43: #{gat_hgcn_forward.11} parent=0 // pred_check_branch
    %304 = sbr.rel (0) target = $region45
  $region44: #{gat_hgcn_forward.11} parent=0 // pred_region
    _
  $region45: #{gat_hgcn_forward.11} parent=0 // pred_fallthru
    _
  // Predicated region
  $region46: #{gat_hgcn_forward.11} parent=0 // pred_check
    _
  $region47: #{gat_hgcn_forward.11} parent=0 // pred_check_branch
    %306 = sbr.rel (0) target = $region49
  $region48: #{gat_hgcn_forward.11} parent=0 // pred_region
    _
  $region49: #{gat_hgcn_forward.11} parent=0 // pred_fallthru
    _

// kernel: gat_hgcn_forward.13
$region0: #{gat_hgcn_forward.13}
  #allocation0 [shape = 'u32[]', space=smem, size = 0x4, offset = 0x4, fixed_abs, tag = 'smem constant byte address 0x4 - core index']
  #allocation1 [shape = 'u32[144,128]{1,0:T(1,128)}', space=vmem, size = 0x12000, scoped, tag = 'internal scratch']
  #allocation2 [shape = 'f32[1,1]{1,0:T(1,128)S(1)}', space=vmem, size = 0x200, scoped, tag = 'scoped memory for gat_hgcn_forward.13']
  %s0 = inlined_call_operand.vmem [shape: f32[16,16], index: 0, kind: input, shape index: {}]
  %s1 = inlined_call_operand.vmem [shape: f32[16,1], index: 1, kind: input, shape index: {}]
  %s2 = inlined_call_operand.vmem [shape: f32[16,1], index: 2, kind: input, shape index: {}]
  %s3 = inlined_call_operand.<no memory space> [shape: f32[1,1], index: 3, kind: input, shape index: {}]
  %s4 = inlined_call_operand.hbm [shape: f32[1,1], index: 4, kind: output, shape index: {}]
  %s5 = sld [smem:[#allocation0]]
  $region26: #{gat_hgcn_forward.13} parent=0
    _
  %s7 = ssub.s32 1, %s5
  %s8 = scalar_select 0, %s7, %s5
  %v9 = vstv %s3
  %10 = vst [vmem:[#allocation2] sm:$0x1] %v9
  $region1: #{gat_hgcn_forward.13} parent=0
    #allocation3 [shape = 'u8[512]{0}', space=vmem, size = 0x400, scoped, tag = 'output window, operand 0, single buffered']
    #allocation4 [shape = 's32[1]{0}', space=sflag, size = 0x4, scoped, tag = 'scoped memory for gat_hgcn_forward.13']
    %11 = vsyncpa [#allocation4], 0
    // Predicated region
    $region2: #{gat_hgcn_forward.13} parent=1 // pred_check
      _
    $region3: #{gat_hgcn_forward.13} parent=1 // pred_check_branch
      %13 = sbr.rel (0) target = $region5
    $region4: #{gat_hgcn_forward.13} parent=1 // pred_region
      _
    $region5: #{gat_hgcn_forward.13} parent=1 // pred_fallthru
      _
    // Predicated region
    $region6: #{gat_hgcn_forward.13} parent=1 // pred_check
      _
    $region7: #{gat_hgcn_forward.13} parent=1 // pred_check_branch
      %15 = sbr.rel (0) target = $region9
    $region8: #{gat_hgcn_forward.13} parent=1 // pred_region
      _
    $region9: #{gat_hgcn_forward.13} parent=1 // pred_fallthru
      _
    // Predicated region
    $region10: #{gat_hgcn_forward.13} parent=1 // pred_check
      _
    $region11: #{gat_hgcn_forward.13} parent=1 // pred_check_branch
      %17 = sbr.rel (0) target = $region13
    $region12: #{gat_hgcn_forward.13} parent=1 // pred_region
      _
    $region13: #{gat_hgcn_forward.13} parent=1 // pred_fallthru
      _
    // Predicated region
    $region14: #{gat_hgcn_forward.13} parent=1 // pred_check
      _
    $region15: #{gat_hgcn_forward.13} parent=1 // pred_check_branch
      %19 = sbr.rel (0) target = $region17
    $region16: #{gat_hgcn_forward.13} parent=1 // pred_region
      _
    $region17: #{gat_hgcn_forward.13} parent=1 // pred_fallthru
      _
    %v20 = vld [vmem:[%s1] sm:$0xff]
    %v21 = vld [vmem:[%s1 + $0x8] sm:$0xff]
    %vm22 = vcmp.gt.f32.partialorder %v20, 0.0
    %vm23 = vcmp.gt.f32.partialorder %v21, 0.0
    %v24 = vld [vmem:[%s0] sm:$0xff]
    %v25 = vld [vmem:[%s0 + $0x8] sm:$0xff]
    %v26 = vsel %vm22, 1, 0
    %v27 = vsel %vm23, 1, 0
    %28 = vset.pattern.permute.xlu0 0
    %29 = vperm.xlu0 %28, %v26
    %v30 = vpop.permute.xlu0 %29
    %31 = vset.pattern.permute.xlu0 0
    %32 = vperm.xlu0 %31, %v27
    %v33 = vpop.permute.xlu0 %32
    %vm34 = vcmp.eq.s32.totalorder %v30, 1
    %vm35 = vcmp.eq.s32.totalorder %v33, 1
    %v36 = vsel %vm34, %v24, -1e+30
    %v37 = vsel %vm35, %v25, -1e+30
    %vm38 = vcmask 130048
    %v39 = vsel %vm38, %v36, -inf
    %v40 = vsel %vm38, %v37, -inf
    %v41 = vmax.f32 %v39, %v40
    %v42 = vrot.slane %v41, 4
    %v43 = vmax.f32 %v41, %v42
    %v44 = vrot.slane %v43, 2
    %v45 = vmax.f32 %v43, %v44
    %v46 = vrot.slane %v45, 1
    %v47 = vmax.f32 %v45, %v46
    %v48 = vld [vmem:[%s2] sm:$0xff]
    %v49 = vld [vmem:[%s2 + $0x8] sm:$0xff]
    %v50 = vld [vmem:[#allocation2] sm:$0x1]
    %v52 = vsel %vm38, %v47, 0
    %54 = vmatprep.subr.mxu0 0.0
    %55 = vmatpush1.msra.mxu0 %v48
    %56 = vmatprep.subr.mxu0 0.0
    %57 = vmatpush1.msra.mxu0 %v49
    %58 = vmatprep.subr.mxu0 0.0
    %59 = vmatpush1.msra.mxu0 0.0
    %60 = vmatprep.subr.mxu0 0.0
    %61 = vmatpush1.msra.mxu0 0.0
    %62 = vmatprep.subr.mxu0 0.0
    %63 = vmatpush1.msra.mxu0 0.0
    %64 = vmatprep.subr.mxu0 0.0
    %65 = vmatpush1.msra.mxu0 0.0
    %66 = vmatprep.subr.mxu0 0.0
    %67 = vmatpush1.msra.mxu0 0.0
    %68 = vmatprep.subr.mxu0 0.0
    %69 = vmatpush1.msra.mxu0 0.0
    %70 = vmatprep.subr.mxu0 0.0
    %71 = vmatpush1.msra.mxu0 0.0
    %72 = vmatprep.subr.mxu0 0.0
    %73 = vmatpush1.msra.mxu0 0.0
    %74 = vmatprep.subr.mxu0 0.0
    %75 = vmatpush1.msra.mxu0 0.0
    %76 = vmatprep.subr.mxu0 0.0
    %77 = vmatpush1.msra.mxu0 0.0
    %78 = vmatprep.subr.mxu0 0.0
    %79 = vmatpush1.msra.mxu0 0.0
    %80 = vmatprep.subr.mxu0 0.0
    %81 = vmatpush1.msra.mxu0 0.0
    %82 = vmatprep.subr.mxu0 0.0
    %83 = vmatpush1.msra.mxu0 0.0
    %84 = vmatprep.subr.mxu0 0.0
    %85 = vmatpush1.msra.mxu0 0.0
    %86 = vmatprep.subr.mxu0 0.0
    %87 = vmatpush1.msra.mxu0 0.0
    %88 = vmatprep.subr.mxu0 0.0
    %89 = vmatpush1.msra.mxu0 0.0
    %90 = vmatprep.subr.mxu0 0.0
    %91 = vmatpush1.msra.mxu0 0.0
    %92 = vmatprep.subr.mxu0 0.0
    %93 = vmatpush1.msra.mxu0 0.0
    %94 = vmatprep.subr.mxu0 0.0
    %95 = vmatpush1.msra.mxu0 0.0
    %96 = vmatprep.subr.mxu0 0.0
    %97 = vmatpush1.msra.mxu0 0.0
    %98 = vmatprep.subr.mxu0 0.0
    %99 = vmatpush1.msra.mxu0 0.0
    %100 = vmatprep.subr.mxu0 0.0
    %101 = vmatpush1.msra.mxu0 0.0
    %102 = vmatprep.subr.mxu0 0.0
    %103 = vmatpush1.msra.mxu0 0.0
    %104 = vmatprep.subr.mxu0 0.0
    %105 = vmatpush1.msra.mxu0 0.0
    %106 = vmatprep.subr.mxu0 0.0
    %107 = vmatpush1.msra.mxu0 0.0
    %108 = vmatprep.subr.mxu0 0.0
    %109 = vmatpush1.msra.mxu0 0.0
    %110 = vmatprep.subr.mxu0 0.0
    %111 = vmatpush1.msra.mxu0 0.0
    %112 = vmatprep.subr.mxu0 0.0
    %113 = vmatpush1.msra.mxu0 0.0
    %114 = vmatprep.subr.mxu0 0.0
    %115 = vmatpush1.msra.mxu0 0.0
    %116 = vmatprep.subr.mxu0 0.0
    %117 = vmatpush1.msra.mxu0 0.0
    %118 = vmatprep.mubr.f32.mxu0 0.0
    %119 = vmatmul.mubr.f32.gmra.mrb[0].mxu0 %v52
    %v120 = vpop.f32.mrb[0].mxu0
    %v121 = vadd.f32 %v50, %v120
    %v122 = vpop.f32.mrb[0].mxu0
    %123 = vdwg.mxu0
    %v124 = vsub.f32 0.0, %v121
    %v125 = vmul.f32 %v124, 1.442695
    %v126 = vpow.pop %v125
    %v127 = vadd.f32 %v126, 1.0
    %v128 = vrcp.pop %v127
    %v129 = vmul.f32 1.0, %v128
    %vm130 = vcmask 0
    %131 = vst.msk [vmem:[#allocation3] sm:$0x1] %vm130, %v129
    // Predicated region
    $region18: #{gat_hgcn_forward.13} parent=1 // pred_check
      _
    $region19: #{gat_hgcn_forward.13} parent=1 // pred_check_branch
      %133 = sbr.rel (0) target = $region21
    $region20: #{gat_hgcn_forward.13} parent=1 // pred_region
      %s135 = ssub.s32 16, 16
      %136 = vsyncadd [#allocation4], %s135
      %s138 = sshll.u32 [#allocation3], 4
      %s139 = int_to_ptr.vmem [resolvable:$true] %s138
      %141 = dma.vmem_to_hbm [thread:$0]  %s139, 16, %s4, [#allocation4]
    $region21: #{gat_hgcn_forward.13} parent=1 // pred_fallthru
      _
    // Predicated region
    $region22: #{gat_hgcn_forward.13} parent=1 // pred_check
      _
    $region23: #{gat_hgcn_forward.13} parent=1 // pred_check_branch
      %143 = sbr.rel (0) target = $region25
    $region24: #{gat_hgcn_forward.13} parent=1 // pred_region
      %144 = dma.done [#allocation4], 16
    $region25: #{gat_hgcn_forward.13} parent=1 // pred_fallthru
      _
    %145 = vsyncpa [#allocation4], 1

</llo_original>
